<compile_context>
chip_gen: v5e
topology: v5e:2x2
jax: 0.10.0
libtpu: 0.0.40
codegen_flags: <defaults>
</compile_context>

<pallas_src>
import math

import jax
import jax.numpy as jnp
from jax.experimental import pallas as pl
from jax.experimental.pallas import tpu as pltpu


# ----------------------------------------------------------------------------
# Fused kernel: one batch element per grid step.
# ----------------------------------------------------------------------------
def _lenet_kernel(x_ref, t1_ref, cb1_ref, c1s_ref, r1s_ref,
                  t2_ref, cb2_ref, c2s_ref, r2s_ref,
                  wf1_ref, fb1_ref, wf2_ref, fb2_ref, wf3_ref, fb3_ref,
                  o_ref, p1_s, p2_s):
    f32 = jnp.float32

    def dot(a, b):
        return jnp.dot(a, b, preferred_element_type=f32)

    # ---- conv1 (1->6, 3x3 valid) + bias + ReLU --------------------------
    # layout: rows = output row i, lanes = out_col*6 + channel  -> (30, 180)
    z1 = dot(x_ref[0, 0:30, :], t1_ref[0])
    z1 = z1 + dot(x_ref[0, 1:31, :], t1_ref[1])
    z1 = z1 + dot(x_ref[0, 2:32, :], t1_ref[2])
    r1 = jnp.maximum(z1 + cb1_ref[...], 0.0)                       # (30, 180)

    # ---- 2x2 max pool (30x30 -> 15x15) via 0/1 selection matmuls --------
    m1 = jnp.maximum(dot(r1, c1s_ref[0]), dot(r1, c1s_ref[1]))     # (30, 90)
    p1_s[...] = jnp.maximum(dot(r1s_ref[0], m1), dot(r1s_ref[1], m1))  # (15, 90)

    # ---- conv2 (6->16, 3x3 valid) + bias + ReLU -------------------------
    # layout: rows = output row, lanes = out_col*16 + channel -> (13, 208)
    z2 = dot(p1_s[0:13, :], t2_ref[0])
    z2 = z2 + dot(p1_s[1:14, :], t2_ref[1])
    z2 = z2 + dot(p1_s[2:15, :], t2_ref[2])
    r2 = jnp.maximum(z2 + cb2_ref[...], 0.0)                       # (13, 208)

    # ---- 2x2 max pool, floor mode (13x13 -> 6x6) ------------------------
    m2 = jnp.maximum(dot(r2, c2s_ref[0]), dot(r2, c2s_ref[1]))     # (13, 96)
    p2_s[...] = jnp.maximum(dot(r2s_ref[0], m2), dot(r2s_ref[1], m2))  # (6, 96)

    # ---- fc1 (576 -> 120): contract rows x lanes of pooled map ----------
    # wf1 columns are pre-permuted on the host to match PyTorch's NCHW
    # x.view(-1, 576) flatten order.
    h1 = dot(p2_s[0:1, :], wf1_ref[0])
    for i in range(1, 6):
        h1 = h1 + dot(p2_s[i:i + 1, :], wf1_ref[i])
    h1 = jnp.maximum(h1 + fb1_ref[...], 0.0)                       # (1, 120)

    # ---- fc2 -> ReLU -> fc3 ---------------------------------------------
    h2 = jnp.maximum(dot(h1, wf2_ref[...]) + fb2_ref[...], 0.0)    # (1, 84)
    o_ref[0] = dot(h2, wf3_ref[...]) + fb3_ref[...]                # (1, 10)


# ----------------------------------------------------------------------------
# Host-side weight preparation (pure permutes / tiny banded matrices; no
# activation data is expanded or written to HBM).
# ----------------------------------------------------------------------------
def _prepare_params(params):
    (c1w, c1b, c2w, c2b, f1w, f1b, f2w, f2b, f3w, f3b) = params
    f32 = jnp.float32

    # conv1 banded matrices: T1[di][a, j*6+c] = c1w[c, 0, di, a-j] (a-j in [0,2])
    a = jnp.arange(32)[:, None]
    j = jnp.arange(30)[None, :]
    dj = a - j
    valid = (dj >= 0) & (dj <= 2)
    djc = jnp.clip(dj, 0, 2)
    t1 = []
    for di in range(3):
        w = c1w[:, 0, di, :]                                   # (6, 3)
        g = jnp.where(valid[None, :, :], w[:, djc], 0.0)       # (6, 32, 30)
        t1.append(jnp.transpose(g, (1, 2, 0)).reshape(32, 180))
    T1 = jnp.stack(t1, axis=0).astype(f32)                     # (3, 32, 180)
    cb1 = jnp.tile(c1b, 30)[None, :].astype(f32)               # (1, 180)

    # pool1 selection matrices (even/odd columns, even/odd rows)
    r = jnp.arange(180)[:, None]
    q = jnp.arange(90)[None, :]
    c1sel = jnp.stack(
        [(r == (2 * (q // 6) + b) * 6 + (q % 6)).astype(f32) for b in range(2)],
        axis=0)                                                # (2, 180, 90)
    hh = jnp.arange(30)[None, :]
    ip = jnp.arange(15)[:, None]
    r1sel = jnp.stack(
        [(hh == 2 * ip + b).astype(f32) for b in range(2)], axis=0)  # (2, 15, 30)

    # conv2 banded matrices: T2[di][w*6+c1, j*16+c2] = c2w[c2, c1, di, w-j]
    p = jnp.arange(90)
    win, c1i = p // 6, p % 6
    bcols = jnp.arange(208)
    jout, c2i = bcols // 16, bcols % 16
    dj2 = win[:, None] - jout[None, :]
    valid2 = (dj2 >= 0) & (dj2 <= 2)
    dj2c = jnp.clip(dj2, 0, 2)
    t2 = []
    for di in range(3):
        w = c2w[:, :, di, :]                                   # (16, 6, 3)
        g = w[c2i[None, :], c1i[:, None], dj2c]                # (90, 208)
        t2.append(jnp.where(valid2, g, 0.0))
    T2 = jnp.stack(t2, axis=0).astype(f32)                     # (3, 90, 208)
    cb2 = jnp.tile(c2b, 13)[None, :].astype(f32)               # (1, 208)

    # pool2 selection matrices (floor mode drops col/row 12)
    r = jnp.arange(208)[:, None]
    q = jnp.arange(96)[None, :]
    c2sel = jnp.stack(
        [(r == (2 * (q // 16) + b) * 16 + (q % 16)).astype(f32) for b in range(2)],
        axis=0)                                                # (2, 208, 96)
    hh = jnp.arange(13)[None, :]
    ip = jnp.arange(6)[:, None]
    r2sel = jnp.stack(
        [(hh == 2 * ip + b).astype(f32) for b in range(2)], axis=0)  # (2, 6, 13)

    # fc1 weight permuted from PyTorch's (c, h, w) flatten to the kernel's
    # (row h, lane = w*16 + c) layout; fc2/fc3 simply transposed.
    wf1 = jnp.transpose(f1w.reshape(120, 16, 6, 6), (2, 3, 1, 0))
    wf1 = wf1.reshape(6, 96, 120).astype(f32)                  # (6, 96, 120)
    fb1 = f1b[None, :].astype(f32)
    wf2 = f2w.T.astype(f32)
    fb2 = f2b[None, :].astype(f32)
    wf3 = f3w.T.astype(f32)
    fb3 = f3b[None, :].astype(f32)

    return (T1, cb1, c1sel, r1sel, T2, cb2, c2sel, r2sel,
            wf1, fb1, wf2, fb2, wf3, fb3)


# ----------------------------------------------------------------------------
# Public forward: one fused pallas_call, grid over the batch.
# ----------------------------------------------------------------------------
def net_forward(x, params):
    """x: (N, 1, 32, 32) float32, NCHW (PyTorch convention)."""
    n = x.shape[0]
    prep = _prepare_params(params)
    x3 = x.reshape(n, 32, 32).astype(jnp.float32)

    def resident(arr):
        zeros = (0,) * arr.ndim
        return pl.BlockSpec(arr.shape, lambda b, _z=zeros: _z)

    flops = 2 * n * (30 * 30 * 9 * 6 + 13 * 13 * 54 * 16
                     + 576 * 120 + 120 * 84 + 84 * 10)
    bytes_accessed = 4 * (x3.size + sum(a.size for a in prep) + n * 10)

    out = pl.pallas_call(
        _lenet_kernel,
        out_shape=jax.ShapeDtypeStruct((n, 1, 10), jnp.float32),
        grid=(n,),
        in_specs=[pl.BlockSpec((1, 32, 32), lambda b: (b, 0, 0))]
                 + [resident(a) for a in prep],
        out_specs=pl.BlockSpec((1, 1, 10), lambda b: (b, 0, 0)),
        scratch_shapes=[pltpu.VMEM((15, 90), jnp.float32),
                        pltpu.VMEM((6, 96), jnp.float32)],
        compiler_params=pltpu.CompilerParams(
            dimension_semantics=("parallel",)),
        cost_estimate=pl.CostEstimate(
            flops=flops, transcendentals=0, bytes_accessed=bytes_accessed),
    )(x3, *prep)
    return out.reshape(n, 10)


# ----------------------------------------------------------------------------
# Pure-JAX reference (high precision) for a correctness cross-check.
# ----------------------------------------------------------------------------
def net_forward_reference(x, params):
    (c1w, c1b, c2w, c2b, f1w, f1b, f2w, f2b, f3w, f3b) = params
    hp = jax.lax.Precision.HIGHEST
    y = jax.lax.conv_general_dilated(
        x, c1w, window_strides=(1, 1), padding="VALID",
        dimension_numbers=("NCHW", "OIHW", "NCHW"), precision=hp)
    y = jnp.maximum(y + c1b[None, :, None, None], 0.0)
    y = jax.lax.reduce_window(y, -jnp.inf, jax.lax.max,
                              (1, 1, 2, 2), (1, 1, 2, 2), "VALID")
    y = jax.lax.conv_general_dilated(
        y, c2w, window_strides=(1, 1), padding="VALID",
        dimension_numbers=("NCHW", "OIHW", "NCHW"), precision=hp)
    y = jnp.maximum(y + c2b[None, :, None, None], 0.0)
    y = jax.lax.reduce_window(y, -jnp.inf, jax.lax.max,
                              (1, 1, 2, 2), (1, 1, 2, 2), "VALID")
    y = y.reshape(y.shape[0], -1)
    y = jnp.maximum(jnp.dot(y, f1w.T, precision=hp) + f1b, 0.0)
    y = jnp.maximum(jnp.dot(y, f2w.T, precision=hp) + f2b, 0.0)
    return jnp.dot(y, f3w.T, precision=hp) + f3b


# ----------------------------------------------------------------------------
# Deterministic PyTorch-style init: U(-1/sqrt(fan_in), 1/sqrt(fan_in))
# ----------------------------------------------------------------------------
def init_params(key):
    def uniform(k, shape, fan_in):
        bound = 1.0 / math.sqrt(fan_in)
        return jax.random.uniform(k, shape, dtype=jnp.float32,
                                  minval=-bound, maxval=bound)

    ks = jax.random.split(key, 10)
    c1w = uniform(ks[0], (6, 1, 3, 3), 1 * 3 * 3)
    c1b = uniform(ks[1], (6,), 1 * 3 * 3)
    c2w = uniform(ks[2], (16, 6, 3, 3), 6 * 3 * 3)
    c2b = uniform(ks[3], (16,), 6 * 3 * 3)
    f1w = uniform(ks[4], (120, 576), 576)
    f1b = uniform(ks[5], (120,), 576)
    f2w = uniform(ks[6], (84, 120), 120)
    f2b = uniform(ks[7], (84,), 120)
    f3w = uniform(ks[8], (10, 84), 84)
    f3b = uniform(ks[9], (10,), 84)
    return (c1w, c1b, c2w, c2b, f1w, f1b, f2w, f2b, f3w, f3b)


if __name__ == "__main__":
    key = jax.random.PRNGKey(0)
    k_params, k_x = jax.random.split(key)
    params = init_params(k_params)

    # Net's forward requires 32x32 single-channel input (-> 16*6*6 flatten).
    x = jax.random.normal(k_x, (2, 1, 32, 32), dtype=jnp.float32)

    out = jax.block_until_ready(jax.jit(net_forward)(x, params))
    ref = jax.block_until_ready(jax.jit(net_forward_reference)(x, params))

    assert out.shape == (2, 10), out.shape
    assert bool(jnp.all(jnp.isfinite(out)))
    max_err = float(jnp.max(jnp.abs(out - ref)))
    assert max_err < 2e-2, f"kernel mismatch vs reference, max abs err {max_err}"
    print("KERNEL_OK")
</pallas_src>

<mosaic_0001>
module attributes {stable_mosaic.version = 11 : i64} {
  func.func @_lenet_kernel(%arg0: i32, %arg1: memref<1x32x32xf32, #tpu.memory_space<vmem>>, %arg2: memref<3x32x180xf32, #tpu.memory_space<vmem>>, %arg3: memref<1x180xf32, #tpu.memory_space<vmem>>, %arg4: memref<2x180x90xf32, #tpu.memory_space<vmem>>, %arg5: memref<2x15x30xf32, #tpu.memory_space<vmem>>, %arg6: memref<3x90x208xf32, #tpu.memory_space<vmem>>, %arg7: memref<1x208xf32, #tpu.memory_space<vmem>>, %arg8: memref<2x208x96xf32, #tpu.memory_space<vmem>>, %arg9: memref<2x6x13xf32, #tpu.memory_space<vmem>>, %arg10: memref<6x96x120xf32, #tpu.memory_space<vmem>>, %arg11: memref<1x120xf32, #tpu.memory_space<vmem>>, %arg12: memref<120x84xf32, #tpu.memory_space<vmem>>, %arg13: memref<1x84xf32, #tpu.memory_space<vmem>>, %arg14: memref<84x10xf32, #tpu.memory_space<vmem>>, %arg15: memref<1x10xf32, #tpu.memory_space<vmem>>, %arg16: memref<1x1x10xf32, #tpu.memory_space<vmem>>, %arg17: memref<15x90xf32, #tpu.memory_space<vmem>>, %arg18: memref<6x96xf32, #tpu.memory_space<vmem>>) attributes {dimension_semantics = [#tpu.dimension_semantics<parallel>], iteration_bounds = array<i64: 2>, scalar_prefetch = 0 : i64, scratch_operands = 2 : i64, tpu.core_type = #tpu.core_type<tc>, window_params = [{transform_indices = @transform_0, window_bounds = array<i64: 1, 32, 32>}, {pipeline_mode = #tpu.pipeline_mode<synchronous>, transform_indices = @transform_1, window_bounds = array<i64: 3, 32, 180>}, {pipeline_mode = #tpu.pipeline_mode<synchronous>, transform_indices = @transform_2, window_bounds = array<i64: 1, 180>}, {pipeline_mode = #tpu.pipeline_mode<synchronous>, transform_indices = @transform_3, window_bounds = array<i64: 2, 180, 90>}, {pipeline_mode = #tpu.pipeline_mode<synchronous>, transform_indices = @transform_4, window_bounds = array<i64: 2, 15, 30>}, {pipeline_mode = #tpu.pipeline_mode<synchronous>, transform_indices = @transform_5, window_bounds = array<i64: 3, 90, 208>}, {pipeline_mode = #tpu.pipeline_mode<synchronous>, transform_indices = @transform_6, window_bounds = array<i64: 1, 208>}, {pipeline_mode = #tpu.pipeline_mode<synchronous>, transform_indices = @transform_7, window_bounds = array<i64: 2, 208, 96>}, {pipeline_mode = #tpu.pipeline_mode<synchronous>, transform_indices = @transform_8, window_bounds = array<i64: 2, 6, 13>}, {pipeline_mode = #tpu.pipeline_mode<synchronous>, transform_indices = @transform_9, window_bounds = array<i64: 6, 96, 120>}, {pipeline_mode = #tpu.pipeline_mode<synchronous>, transform_indices = @transform_10, window_bounds = array<i64: 1, 120>}, {pipeline_mode = #tpu.pipeline_mode<synchronous>, transform_indices = @transform_11, window_bounds = array<i64: 120, 84>}, {pipeline_mode = #tpu.pipeline_mode<synchronous>, transform_indices = @transform_12, window_bounds = array<i64: 1, 84>}, {pipeline_mode = #tpu.pipeline_mode<synchronous>, transform_indices = @transform_13, window_bounds = array<i64: 84, 10>}, {pipeline_mode = #tpu.pipeline_mode<synchronous>, transform_indices = @transform_14, window_bounds = array<i64: 1, 10>}, {transform_indices = @transform_15, window_bounds = array<i64: 1, 1, 10>}]} {
    %c0 = arith.constant 0 : index
    %c0_0 = arith.constant 0 : index
    %c0_1 = arith.constant 0 : index
    %0 = vector.load %arg1[%c0, %c0_0, %c0_1] : memref<1x32x32xf32, #tpu.memory_space<vmem>>, vector<1x30x32xf32>
    %1 = vector.shape_cast %0 : vector<1x30x32xf32> to vector<30x32xf32>
    %c0_2 = arith.constant 0 : index
    %c0_3 = arith.constant 0 : index
    %c0_4 = arith.constant 0 : index
    %2 = vector.load %arg2[%c0_2, %c0_3, %c0_4] : memref<3x32x180xf32, #tpu.memory_space<vmem>>, vector<1x32x180xf32>
    %3 = vector.shape_cast %2 : vector<1x32x180xf32> to vector<32x180xf32>
    %cst = arith.constant dense<0.000000e+00> : vector<30x180xf32>
    %4 = tpu.matmul %1, %3, %cst {dimension_numbers = #tpu.dot_dimension_numbers<[1], [0], [0], [1], [0, 0, 1, 1], [], []>} : vector<30x32xf32>, vector<32x180xf32>, vector<30x180xf32> -> vector<30x180xf32>
    %c0_5 = arith.constant 0 : index
    %c1 = arith.constant 1 : index
    %c0_6 = arith.constant 0 : index
    %5 = vector.load %arg1[%c0_5, %c1, %c0_6] : memref<1x32x32xf32, #tpu.memory_space<vmem>>, vector<1x30x32xf32>
    %6 = vector.shape_cast %5 : vector<1x30x32xf32> to vector<30x32xf32>
    %c1_7 = arith.constant 1 : index
    %c0_8 = arith.constant 0 : index
    %c0_9 = arith.constant 0 : index
    %7 = vector.load %arg2[%c1_7, %c0_8, %c0_9] : memref<3x32x180xf32, #tpu.memory_space<vmem>>, vector<1x32x180xf32>
    %8 = vector.shape_cast %7 : vector<1x32x180xf32> to vector<32x180xf32>
    %cst_10 = arith.constant dense<0.000000e+00> : vector<30x180xf32>
    %9 = tpu.matmul %6, %8, %cst_10 {dimension_numbers = #tpu.dot_dimension_numbers<[1], [0], [0], [1], [0, 0, 1, 1], [], []>} : vector<30x32xf32>, vector<32x180xf32>, vector<30x180xf32> -> vector<30x180xf32>
    %10 = arith.addf %4, %9 : vector<30x180xf32>
    %c0_11 = arith.constant 0 : index
    %c2 = arith.constant 2 : index
    %c0_12 = arith.constant 0 : index
    %11 = vector.load %arg1[%c0_11, %c2, %c0_12] : memref<1x32x32xf32, #tpu.memory_space<vmem>>, vector<1x30x32xf32>
    %12 = vector.shape_cast %11 : vector<1x30x32xf32> to vector<30x32xf32>
    %c2_13 = arith.constant 2 : index
    %c0_14 = arith.constant 0 : index
    %c0_15 = arith.constant 0 : index
    %13 = vector.load %arg2[%c2_13, %c0_14, %c0_15] : memref<3x32x180xf32, #tpu.memory_space<vmem>>, vector<1x32x180xf32>
    %14 = vector.shape_cast %13 : vector<1x32x180xf32> to vector<32x180xf32>
    %cst_16 = arith.constant dense<0.000000e+00> : vector<30x180xf32>
    %15 = tpu.matmul %12, %14, %cst_16 {dimension_numbers = #tpu.dot_dimension_numbers<[1], [0], [0], [1], [0, 0, 1, 1], [], []>} : vector<30x32xf32>, vector<32x180xf32>, vector<30x180xf32> -> vector<30x180xf32>
    %16 = arith.addf %10, %15 : vector<30x180xf32>
    %c0_17 = arith.constant 0 : index
    %c0_18 = arith.constant 0 : index
    %17 = vector.load %arg3[%c0_17, %c0_18] : memref<1x180xf32, #tpu.memory_space<vmem>>, vector<1x180xf32>
    %18 = vector.broadcast %17 : vector<1x180xf32> to vector<30x180xf32>
    %19 = arith.addf %16, %18 : vector<30x180xf32>
    %cst_19 = arith.constant 0.000000e+00 : f32
    %20 = vector.broadcast %cst_19 : f32 to vector<30x180xf32>
    %21 = arith.maximumf %19, %20 : vector<30x180xf32>
    %c0_20 = arith.constant 0 : index
    %c0_21 = arith.constant 0 : index
    %c0_22 = arith.constant 0 : index
    %22 = vector.load %arg4[%c0_20, %c0_21, %c0_22] : memref<2x180x90xf32, #tpu.memory_space<vmem>>, vector<1x180x90xf32>
    %23 = vector.shape_cast %22 : vector<1x180x90xf32> to vector<180x90xf32>
    %cst_23 = arith.constant dense<0.000000e+00> : vector<30x90xf32>
    %24 = tpu.matmul %21, %23, %cst_23 {dimension_numbers = #tpu.dot_dimension_numbers<[1], [0], [0], [1], [0, 0, 1, 1], [], []>} : vector<30x180xf32>, vector<180x90xf32>, vector<30x90xf32> -> vector<30x90xf32>
    %c1_24 = arith.constant 1 : index
    %c0_25 = arith.constant 0 : index
    %c0_26 = arith.constant 0 : index
    %25 = vector.load %arg4[%c1_24, %c0_25, %c0_26] : memref<2x180x90xf32, #tpu.memory_space<vmem>>, vector<1x180x90xf32>
    %26 = vector.shape_cast %25 : vector<1x180x90xf32> to vector<180x90xf32>
    %cst_27 = arith.constant dense<0.000000e+00> : vector<30x90xf32>
    %27 = tpu.matmul %21, %26, %cst_27 {dimension_numbers = #tpu.dot_dimension_numbers<[1], [0], [0], [1], [0, 0, 1, 1], [], []>} : vector<30x180xf32>, vector<180x90xf32>, vector<30x90xf32> -> vector<30x90xf32>
    %28 = arith.maximumf %24, %27 : vector<30x90xf32>
    %c0_28 = arith.constant 0 : index
    %c0_29 = arith.constant 0 : index
    %c0_30 = arith.constant 0 : index
    %29 = vector.load %arg5[%c0_28, %c0_29, %c0_30] : memref<2x15x30xf32, #tpu.memory_space<vmem>>, vector<1x15x30xf32>
    %30 = vector.shape_cast %29 : vector<1x15x30xf32> to vector<15x30xf32>
    %cst_31 = arith.constant dense<0.000000e+00> : vector<15x90xf32>
    %31 = tpu.matmul %30, %28, %cst_31 {dimension_numbers = #tpu.dot_dimension_numbers<[1], [0], [0], [1], [0, 0, 1, 1], [], []>} : vector<15x30xf32>, vector<30x90xf32>, vector<15x90xf32> -> vector<15x90xf32>
    %c1_32 = arith.constant 1 : index
    %c0_33 = arith.constant 0 : index
    %c0_34 = arith.constant 0 : index
    %32 = vector.load %arg5[%c1_32, %c0_33, %c0_34] : memref<2x15x30xf32, #tpu.memory_space<vmem>>, vector<1x15x30xf32>
    %33 = vector.shape_cast %32 : vector<1x15x30xf32> to vector<15x30xf32>
    %cst_35 = arith.constant dense<0.000000e+00> : vector<15x90xf32>
    %34 = tpu.matmul %33, %28, %cst_35 {dimension_numbers = #tpu.dot_dimension_numbers<[1], [0], [0], [1], [0, 0, 1, 1], [], []>} : vector<15x30xf32>, vector<30x90xf32>, vector<15x90xf32> -> vector<15x90xf32>
    %35 = arith.maximumf %31, %34 : vector<15x90xf32>
    %c0_36 = arith.constant 0 : index
    %c0_37 = arith.constant 0 : index
    %36 = vector.load %arg17[%c0_36, %c0_37] : memref<15x90xf32, #tpu.memory_space<vmem>>, vector<15x90xf32>
    tpu.vector_store %arg17[%c0_36, %c0_37], %35 {strides = array<i32>} : memref<15x90xf32, #tpu.memory_space<vmem>>, vector<15x90xf32>,
    %c0_38 = arith.constant 0 : index
    %c0_39 = arith.constant 0 : index
    %37 = vector.load %arg17[%c0_38, %c0_39] : memref<15x90xf32, #tpu.memory_space<vmem>>, vector<13x90xf32>
    %c0_40 = arith.constant 0 : index
    %c0_41 = arith.constant 0 : index
    %c0_42 = arith.constant 0 : index
    %38 = vector.load %arg6[%c0_40, %c0_41, %c0_42] : memref<3x90x208xf32, #tpu.memory_space<vmem>>, vector<1x90x208xf32>
    %39 = vector.shape_cast %38 : vector<1x90x208xf32> to vector<90x208xf32>
    %cst_43 = arith.constant dense<0.000000e+00> : vector<13x208xf32>
    %40 = tpu.matmul %37, %39, %cst_43 {dimension_numbers = #tpu.dot_dimension_numbers<[1], [0], [0], [1], [0, 0, 1, 1], [], []>} : vector<13x90xf32>, vector<90x208xf32>, vector<13x208xf32> -> vector<13x208xf32>
    %c1_44 = arith.constant 1 : index
    %c0_45 = arith.constant 0 : index
    %41 = vector.load %arg17[%c1_44, %c0_45] : memref<15x90xf32, #tpu.memory_space<vmem>>, vector<13x90xf32>
    %c1_46 = arith.constant 1 : index
    %c0_47 = arith.constant 0 : index
    %c0_48 = arith.constant 0 : index
    %42 = vector.load %arg6[%c1_46, %c0_47, %c0_48] : memref<3x90x208xf32, #tpu.memory_space<vmem>>, vector<1x90x208xf32>
    %43 = vector.shape_cast %42 : vector<1x90x208xf32> to vector<90x208xf32>
    %cst_49 = arith.constant dense<0.000000e+00> : vector<13x208xf32>
    %44 = tpu.matmul %41, %43, %cst_49 {dimension_numbers = #tpu.dot_dimension_numbers<[1], [0], [0], [1], [0, 0, 1, 1], [], []>} : vector<13x90xf32>, vector<90x208xf32>, vector<13x208xf32> -> vector<13x208xf32>
    %45 = arith.addf %40, %44 : vector<13x208xf32>
    %c2_50 = arith.constant 2 : index
    %c0_51 = arith.constant 0 : index
    %46 = vector.load %arg17[%c2_50, %c0_51] : memref<15x90xf32, #tpu.memory_space<vmem>>, vector<13x90xf32>
    %c2_52 = arith.constant 2 : index
    %c0_53 = arith.constant 0 : index
    %c0_54 = arith.constant 0 : index
    %47 = vector.load %arg6[%c2_52, %c0_53, %c0_54] : memref<3x90x208xf32, #tpu.memory_space<vmem>>, vector<1x90x208xf32>
    %48 = vector.shape_cast %47 : vector<1x90x208xf32> to vector<90x208xf32>
    %cst_55 = arith.constant dense<0.000000e+00> : vector<13x208xf32>
    %49 = tpu.matmul %46, %48, %cst_55 {dimension_numbers = #tpu.dot_dimension_numbers<[1], [0], [0], [1], [0, 0, 1, 1], [], []>} : vector<13x90xf32>, vector<90x208xf32>, vector<13x208xf32> -> vector<13x208xf32>
    %50 = arith.addf %45, %49 : vector<13x208xf32>
    %c0_56 = arith.constant 0 : index
    %c0_57 = arith.constant 0 : index
    %51 = vector.load %arg7[%c0_56, %c0_57] : memref<1x208xf32, #tpu.memory_space<vmem>>, vector<1x208xf32>
    %52 = vector.broadcast %51 : vector<1x208xf32> to vector<13x208xf32>
    %53 = arith.addf %50, %52 : vector<13x208xf32>
    %cst_58 = arith.constant 0.000000e+00 : f32
    %54 = vector.broadcast %cst_58 : f32 to vector<13x208xf32>
    %55 = arith.maximumf %53, %54 : vector<13x208xf32>
    %c0_59 = arith.constant 0 : index
    %c0_60 = arith.constant 0 : index
    %c0_61 = arith.constant 0 : index
    %56 = vector.load %arg8[%c0_59, %c0_60, %c0_61] : memref<2x208x96xf32, #tpu.memory_space<vmem>>, vector<1x208x96xf32>
    %57 = vector.shape_cast %56 : vector<1x208x96xf32> to vector<208x96xf32>
    %cst_62 = arith.constant dense<0.000000e+00> : vector<13x96xf32>
    %58 = tpu.matmul %55, %57, %cst_62 {dimension_numbers = #tpu.dot_dimension_numbers<[1], [0], [0], [1], [0, 0, 1, 1], [], []>} : vector<13x208xf32>, vector<208x96xf32>, vector<13x96xf32> -> vector<13x96xf32>
    %c1_63 = arith.constant 1 : index
    %c0_64 = arith.constant 0 : index
    %c0_65 = arith.constant 0 : index
    %59 = vector.load %arg8[%c1_63, %c0_64, %c0_65] : memref<2x208x96xf32, #tpu.memory_space<vmem>>, vector<1x208x96xf32>
    %60 = vector.shape_cast %59 : vector<1x208x96xf32> to vector<208x96xf32>
    %cst_66 = arith.constant dense<0.000000e+00> : vector<13x96xf32>
    %61 = tpu.matmul %55, %60, %cst_66 {dimension_numbers = #tpu.dot_dimension_numbers<[1], [0], [0], [1], [0, 0, 1, 1], [], []>} : vector<13x208xf32>, vector<208x96xf32>, vector<13x96xf32> -> vector<13x96xf32>
    %62 = arith.maximumf %58, %61 : vector<13x96xf32>
    %c0_67 = arith.constant 0 : index
    %c0_68 = arith.constant 0 : index
    %c0_69 = arith.constant 0 : index
    %63 = vector.load %arg9[%c0_67, %c0_68, %c0_69] : memref<2x6x13xf32, #tpu.memory_space<vmem>>, vector<1x6x13xf32>
    %64 = vector.shape_cast %63 : vector<1x6x13xf32> to vector<6x13xf32>
    %cst_70 = arith.constant dense<0.000000e+00> : vector<6x96xf32>
    %65 = tpu.matmul %64, %62, %cst_70 {dimension_numbers = #tpu.dot_dimension_numbers<[1], [0], [0], [1], [0, 0, 1, 1], [], []>} : vector<6x13xf32>, vector<13x96xf32>, vector<6x96xf32> -> vector<6x96xf32>
    %c1_71 = arith.constant 1 : index
    %c0_72 = arith.constant 0 : index
    %c0_73 = arith.constant 0 : index
    %66 = vector.load %arg9[%c1_71, %c0_72, %c0_73] : memref<2x6x13xf32, #tpu.memory_space<vmem>>, vector<1x6x13xf32>
    %67 = vector.shape_cast %66 : vector<1x6x13xf32> to vector<6x13xf32>
    %cst_74 = arith.constant dense<0.000000e+00> : vector<6x96xf32>
    %68 = tpu.matmul %67, %62, %cst_74 {dimension_numbers = #tpu.dot_dimension_numbers<[1], [0], [0], [1], [0, 0, 1, 1], [], []>} : vector<6x13xf32>, vector<13x96xf32>, vector<6x96xf32> -> vector<6x96xf32>
    %69 = arith.maximumf %65, %68 : vector<6x96xf32>
    %c0_75 = arith.constant 0 : index
    %c0_76 = arith.constant 0 : index
    %70 = vector.load %arg18[%c0_75, %c0_76] : memref<6x96xf32, #tpu.memory_space<vmem>>, vector<6x96xf32>
    tpu.vector_store %arg18[%c0_75, %c0_76], %69 {strides = array<i32>} : memref<6x96xf32, #tpu.memory_space<vmem>>, vector<6x96xf32>,
    %c0_77 = arith.constant 0 : index
    %c0_78 = arith.constant 0 : index
    %71 = vector.load %arg18[%c0_77, %c0_78] : memref<6x96xf32, #tpu.memory_space<vmem>>, vector<1x96xf32>
    %c0_79 = arith.constant 0 : index
    %c0_80 = arith.constant 0 : index
    %c0_81 = arith.constant 0 : index
    %72 = vector.load %arg10[%c0_79, %c0_80, %c0_81] : memref<6x96x120xf32, #tpu.memory_space<vmem>>, vector<1x96x120xf32>
    %73 = vector.shape_cast %72 : vector<1x96x120xf32> to vector<96x120xf32>
    %cst_82 = arith.constant dense<0.000000e+00> : vector<1x120xf32>
    %74 = tpu.matmul %71, %73, %cst_82 {dimension_numbers = #tpu.dot_dimension_numbers<[1], [0], [0], [1], [0, 0, 1, 1], [], []>} : vector<1x96xf32>, vector<96x120xf32>, vector<1x120xf32> -> vector<1x120xf32>
    %c1_83 = arith.constant 1 : index
    %c0_84 = arith.constant 0 : index
    %75 = vector.load %arg18[%c1_83, %c0_84] : memref<6x96xf32, #tpu.memory_space<vmem>>, vector<1x96xf32>
    %c1_85 = arith.constant 1 : index
    %c0_86 = arith.constant 0 : index
    %c0_87 = arith.constant 0 : index
    %76 = vector.load %arg10[%c1_85, %c0_86, %c0_87] : memref<6x96x120xf32, #tpu.memory_space<vmem>>, vector<1x96x120xf32>
    %77 = vector.shape_cast %76 : vector<1x96x120xf32> to vector<96x120xf32>
    %cst_88 = arith.constant dense<0.000000e+00> : vector<1x120xf32>
    %78 = tpu.matmul %75, %77, %cst_88 {dimension_numbers = #tpu.dot_dimension_numbers<[1], [0], [0], [1], [0, 0, 1, 1], [], []>} : vector<1x96xf32>, vector<96x120xf32>, vector<1x120xf32> -> vector<1x120xf32>
    %79 = arith.addf %74, %78 : vector<1x120xf32>
    %c2_89 = arith.constant 2 : index
    %c0_90 = arith.constant 0 : index
    %80 = vector.load %arg18[%c2_89, %c0_90] : memref<6x96xf32, #tpu.memory_space<vmem>>, vector<1x96xf32>
    %c2_91 = arith.constant 2 : index
    %c0_92 = arith.constant 0 : index
    %c0_93 = arith.constant 0 : index
    %81 = vector.load %arg10[%c2_91, %c0_92, %c0_93] : memref<6x96x120xf32, #tpu.memory_space<vmem>>, vector<1x96x120xf32>
    %82 = vector.shape_cast %81 : vector<1x96x120xf32> to vector<96x120xf32>
    %cst_94 = arith.constant dense<0.000000e+00> : vector<1x120xf32>
    %83 = tpu.matmul %80, %82, %cst_94 {dimension_numbers = #tpu.dot_dimension_numbers<[1], [0], [0], [1], [0, 0, 1, 1], [], []>} : vector<1x96xf32>, vector<96x120xf32>, vector<1x120xf32> -> vector<1x120xf32>
    %84 = arith.addf %79, %83 : vector<1x120xf32>
    %c3 = arith.constant 3 : index
    %c0_95 = arith.constant 0 : index
    %85 = vector.load %arg18[%c3, %c0_95] : memref<6x96xf32, #tpu.memory_space<vmem>>, vector<1x96xf32>
    %c3_96 = arith.constant 3 : index
    %c0_97 = arith.constant 0 : index
    %c0_98 = arith.constant 0 : index
    %86 = vector.load %arg10[%c3_96, %c0_97, %c0_98] : memref<6x96x120xf32, #tpu.memory_space<vmem>>, vector<1x96x120xf32>
    %87 = vector.shape_cast %86 : vector<1x96x120xf32> to vector<96x120xf32>
    %cst_99 = arith.constant dense<0.000000e+00> : vector<1x120xf32>
    %88 = tpu.matmul %85, %87, %cst_99 {dimension_numbers = #tpu.dot_dimension_numbers<[1], [0], [0], [1], [0, 0, 1, 1], [], []>} : vector<1x96xf32>, vector<96x120xf32>, vector<1x120xf32> -> vector<1x120xf32>
    %89 = arith.addf %84, %88 : vector<1x120xf32>
    %c4 = arith.constant 4 : index
    %c0_100 = arith.constant 0 : index
    %90 = vector.load %arg18[%c4, %c0_100] : memref<6x96xf32, #tpu.memory_space<vmem>>, vector<1x96xf32>
    %c4_101 = arith.constant 4 : index
    %c0_102 = arith.constant 0 : index
    %c0_103 = arith.constant 0 : index
    %91 = vector.load %arg10[%c4_101, %c0_102, %c0_103] : memref<6x96x120xf32, #tpu.memory_space<vmem>>, vector<1x96x120xf32>
    %92 = vector.shape_cast %91 : vector<1x96x120xf32> to vector<96x120xf32>
    %cst_104 = arith.constant dense<0.000000e+00> : vector<1x120xf32>
    %93 = tpu.matmul %90, %92, %cst_104 {dimension_numbers = #tpu.dot_dimension_numbers<[1], [0], [0], [1], [0, 0, 1, 1], [], []>} : vector<1x96xf32>, vector<96x120xf32>, vector<1x120xf32> -> vector<1x120xf32>
    %94 = arith.addf %89, %93 : vector<1x120xf32>
    %c5 = arith.constant 5 : index
    %c0_105 = arith.constant 0 : index
    %95 = vector.load %arg18[%c5, %c0_105] : memref<6x96xf32, #tpu.memory_space<vmem>>, vector<1x96xf32>
    %c5_106 = arith.constant 5 : index
    %c0_107 = arith.constant 0 : index
    %c0_108 = arith.constant 0 : index
    %96 = vector.load %arg10[%c5_106, %c0_107, %c0_108] : memref<6x96x120xf32, #tpu.memory_space<vmem>>, vector<1x96x120xf32>
    %97 = vector.shape_cast %96 : vector<1x96x120xf32> to vector<96x120xf32>
    %cst_109 = arith.constant dense<0.000000e+00> : vector<1x120xf32>
    %98 = tpu.matmul %95, %97, %cst_109 {dimension_numbers = #tpu.dot_dimension_numbers<[1], [0], [0], [1], [0, 0, 1, 1], [], []>} : vector<1x96xf32>, vector<96x120xf32>, vector<1x120xf32> -> vector<1x120xf32>
    %99 = arith.addf %94, %98 : vector<1x120xf32>
    %c0_110 = arith.constant 0 : index
    %c0_111 = arith.constant 0 : index
    %100 = vector.load %arg11[%c0_110, %c0_111] : memref<1x120xf32, #tpu.memory_space<vmem>>, vector<1x120xf32>
    %101 = arith.addf %99, %100 : vector<1x120xf32>
    %cst_112 = arith.constant 0.000000e+00 : f32
    %102 = vector.broadcast %cst_112 : f32 to vector<1x120xf32>
    %103 = arith.maximumf %101, %102 : vector<1x120xf32>
    %c0_113 = arith.constant 0 : index
    %c0_114 = arith.constant 0 : index
    %104 = vector.load %arg12[%c0_113, %c0_114] : memref<120x84xf32, #tpu.memory_space<vmem>>, vector<120x84xf32>
    %cst_115 = arith.constant dense<0.000000e+00> : vector<1x84xf32>
    %105 = tpu.matmul %103, %104, %cst_115 {dimension_numbers = #tpu.dot_dimension_numbers<[1], [0], [0], [1], [0, 0, 1, 1], [], []>} : vector<1x120xf32>, vector<120x84xf32>, vector<1x84xf32> -> vector<1x84xf32>
    %c0_116 = arith.constant 0 : index
    %c0_117 = arith.constant 0 : index
    %106 = vector.load %arg13[%c0_116, %c0_117] : memref<1x84xf32, #tpu.memory_space<vmem>>, vector<1x84xf32>
    %107 = arith.addf %105, %106 : vector<1x84xf32>
    %cst_118 = arith.constant 0.000000e+00 : f32
    %108 = vector.broadcast %cst_118 : f32 to vector<1x84xf32>
    %109 = arith.maximumf %107, %108 : vector<1x84xf32>
    %c0_119 = arith.constant 0 : index
    %c0_120 = arith.constant 0 : index
    %110 = vector.load %arg14[%c0_119, %c0_120] : memref<84x10xf32, #tpu.memory_space<vmem>>, vector<84x10xf32>
    %cst_121 = arith.constant dense<0.000000e+00> : vector<1x10xf32>
    %111 = tpu.matmul %109, %110, %cst_121 {dimension_numbers = #tpu.dot_dimension_numbers<[1], [0], [0], [1], [0, 0, 1, 1], [], []>} : vector<1x84xf32>, vector<84x10xf32>, vector<1x10xf32> -> vector<1x10xf32>
    %c0_122 = arith.constant 0 : index
    %c0_123 = arith.constant 0 : index
    %112 = vector.load %arg15[%c0_122, %c0_123] : memref<1x10xf32, #tpu.memory_space<vmem>>, vector<1x10xf32>
    %113 = arith.addf %111, %112 : vector<1x10xf32>
    %c0_124 = arith.constant 0 : index
    %c0_125 = arith.constant 0 : index
    %c0_126 = arith.constant 0 : index
    %114 = vector.load %arg16[%c0_124, %c0_125, %c0_126] : memref<1x1x10xf32, #tpu.memory_space<vmem>>, vector<1x1x10xf32>
    %115 = vector.shape_cast %114 : vector<1x1x10xf32> to vector<1x10xf32>
    %116 = vector.shape_cast %113 : vector<1x10xf32> to vector<1x1x10xf32>
    tpu.vector_store %arg16[%c0_124, %c0_125, %c0_126], %116 {strides = array<i32>} : memref<1x1x10xf32, #tpu.memory_space<vmem>>, vector<1x1x10xf32>,
    return
  }
  func.func @transform_0(%arg0: i32) -> (i32, i32, i32) {
    %c0_i32 = arith.constant 0 : i32
    %c0_i32_0 = arith.constant 0 : i32
    %c0_i32_1 = arith.constant 0 : i32
    return %arg0, %c0_i32, %c0_i32_0 : i32, i32, i32
  }
  func.func @transform_1(%arg0: i32) -> (i32, i32, i32) {
    %c0_i32 = arith.constant 0 : i32
    %c0_i32_0 = arith.constant 0 : i32
    %c0_i32_1 = arith.constant 0 : i32
    %c0_i32_2 = arith.constant 0 : i32
    return %c0_i32, %c0_i32_0, %c0_i32_1 : i32, i32, i32
  }
  func.func @transform_2(%arg0: i32) -> (i32, i32) {
    %c0_i32 = arith.constant 0 : i32
    %c0_i32_0 = arith.constant 0 : i32
    %c0_i32_1 = arith.constant 0 : i32
    return %c0_i32, %c0_i32_0 : i32, i32
  }
  func.func @transform_3(%arg0: i32) -> (i32, i32, i32) {
    %c0_i32 = arith.constant 0 : i32
    %c0_i32_0 = arith.constant 0 : i32
    %c0_i32_1 = arith.constant 0 : i32
    %c0_i32_2 = arith.constant 0 : i32
    return %c0_i32, %c0_i32_0, %c0_i32_1 : i32, i32, i32
  }
  func.func @transform_4(%arg0: i32) -> (i32, i32, i32) {
    %c0_i32 = arith.constant 0 : i32
    %c0_i32_0 = arith.constant 0 : i32
    %c0_i32_1 = arith.constant 0 : i32
    %c0_i32_2 = arith.constant 0 : i32
    return %c0_i32, %c0_i32_0, %c0_i32_1 : i32, i32, i32
  }
  func.func @transform_5(%arg0: i32) -> (i32, i32, i32) {
    %c0_i32 = arith.constant 0 : i32
    %c0_i32_0 = arith.constant 0 : i32
    %c0_i32_1 = arith.constant 0 : i32
    %c0_i32_2 = arith.constant 0 : i32
    return %c0_i32, %c0_i32_0, %c0_i32_1 : i32, i32, i32
  }
  func.func @transform_6(%arg0: i32) -> (i32, i32) {
    %c0_i32 = arith.constant 0 : i32
    %c0_i32_0 = arith.constant 0 : i32
    %c0_i32_1 = arith.constant 0 : i32
    return %c0_i32, %c0_i32_0 : i32, i32
  }
  func.func @transform_7(%arg0: i32) -> (i32, i32, i32) {
    %c0_i32 = arith.constant 0 : i32
    %c0_i32_0 = arith.constant 0 : i32
    %c0_i32_1 = arith.constant 0 : i32
    %c0_i32_2 = arith.constant 0 : i32
    return %c0_i32, %c0_i32_0, %c0_i32_1 : i32, i32, i32
  }
  func.func @transform_8(%arg0: i32) -> (i32, i32, i32) {
    %c0_i32 = arith.constant 0 : i32
    %c0_i32_0 = arith.constant 0 : i32
    %c0_i32_1 = arith.constant 0 : i32
    %c0_i32_2 = arith.constant 0 : i32
    return %c0_i32, %c0_i32_0, %c0_i32_1 : i32, i32, i32
  }
  func.func @transform_9(%arg0: i32) -> (i32, i32, i32) {
    %c0_i32 = arith.constant 0 : i32
    %c0_i32_0 = arith.constant 0 : i32
    %c0_i32_1 = arith.constant 0 : i32
    %c0_i32_2 = arith.constant 0 : i32
    return %c0_i32, %c0_i32_0, %c0_i32_1 : i32, i32, i32
  }
  func.func @transform_10(%arg0: i32) -> (i32, i32) {
    %c0_i32 = arith.constant 0 : i32
    %c0_i32_0 = arith.constant 0 : i32
    %c0_i32_1 = arith.constant 0 : i32
    return %c0_i32, %c0_i32_0 : i32, i32
  }
  func.func @transform_11(%arg0: i32) -> (i32, i32) {
    %c0_i32 = arith.constant 0 : i32
    %c0_i32_0 = arith.constant 0 : i32
    %c0_i32_1 = arith.constant 0 : i32
    return %c0_i32, %c0_i32_0 : i32, i32
  }
  func.func @transform_12(%arg0: i32) -> (i32, i32) {
    %c0_i32 = arith.constant 0 : i32
    %c0_i32_0 = arith.constant 0 : i32
    %c0_i32_1 = arith.constant 0 : i32
    return %c0_i32, %c0_i32_0 : i32, i32
  }
  func.func @transform_13(%arg0: i32) -> (i32, i32) {
    %c0_i32 = arith.constant 0 : i32
    %c0_i32_0 = arith.constant 0 : i32
    %c0_i32_1 = arith.constant 0 : i32
    return %c0_i32, %c0_i32_0 : i32, i32
  }
  func.func @transform_14(%arg0: i32) -> (i32, i32) {
    %c0_i32 = arith.constant 0 : i32
    %c0_i32_0 = arith.constant 0 : i32
    %c0_i32_1 = arith.constant 0 : i32
    return %c0_i32, %c0_i32_0 : i32, i32
  }
  func.func @transform_15(%arg0: i32) -> (i32, i32, i32) {
    %c0_i32 = arith.constant 0 : i32
    %c0_i32_0 = arith.constant 0 : i32
    %c0_i32_1 = arith.constant 0 : i32
    return %arg0, %c0_i32, %c0_i32_0 : i32, i32, i32
  }
}

</mosaic_0001>

<llo_original>
// kernel: tile.13
$region0: #{tile.13}
  #allocation0 [shape = 's32[1]{0}', space=sflag, size = 0x4, scoped, tag = 'scoped memory for tile.13']
  %s0 = inlined_call_operand.vmem [shape: f32[6], index: 0, kind: input, shape index: {}]
  %s1 = inlined_call_operand.vmem [shape: f32[30,6], index: 1, kind: output, shape index: {}]
  // Predicated region
  $region2: #{tile.13} parent=0 // pred_check
    _
  $region3: #{tile.13} parent=0 // pred_check_branch
    %3 = sbr.rel (0) target = $region5
  $region4: #{tile.13} parent=0 // pred_region
    _
  $region5: #{tile.13} parent=0 // pred_fallthru
    _
  %v4 = vld [vmem:[%s0] ss:$0 sm:$0xff]
  %5 = vst [vmem:[%s1] sm:$0xff] %v4
  %s6 = scalar_lea.vmem %s1, 8
  %7 = vst [vmem:[%s6] sm:$0xff] %v4
  %s8 = scalar_lea.vmem %s1, 16
  %9 = vst [vmem:[%s8] sm:$0xff] %v4
  %s10 = scalar_lea.vmem %s1, 24
  %11 = vst [vmem:[%s10] sm:$0xff] %v4

// kernel: tile.14
$region0: #{tile.14}
  %s0 = inlined_call_operand.vmem [shape: f32[30,6], index: 0, kind: input, shape index: {}]
  %s1 = inlined_call_operand.vmem [shape: f32[1,180], index: 1, kind: output, shape index: {}]
  $region1: #{tile.14} parent=0
    #allocation0 [shape = 'u8[8192]{0}', space=vmem, size = 0x2000, scoped, tag = 'scoped mem for output reshape']
    %v2 = vld [vmem:[%s0] sm:$0x1]
    %vm3 = vcmask 48128
    %4 = vst.msk [vmem:[#allocation0] sm:$0x1] %vm3, %v2
    %s5 = scalar_lea.vmem %s0, 21
    %v6 = vld [vmem:[%s5] sm:$0x1]
    %s7 = scalar_lea.vmem %s0, 21
    %v8 = vld [vmem:[%s7] sm:$0x1]
    %vm9 = vcmask 15360
    %v10 = vsel %vm9, %v8, %v6
    %11 = vrot.lane.b32.xlu0 %v10, 126
    %v12 = vpop.permute.xlu0 %11
    %vm13 = vcmask 31744
    %s14 = scalar_lea.vmem [#allocation0], 8
    %15 = vst.msk [vmem:[%s14] sm:$0x1] %vm13, %v12
    %vm16 = vcmask 1048560
    %17 = vst.msk [vmem:[#allocation0] sm:$0x1] %vm16, %v12
    %s18 = scalar_lea.vmem %s0, 20
    %v19 = vld [vmem:[%s18] sm:$0x1]
    %20 = vrot.lane.b32.xlu0 %v19, 120
    %v21 = vpop.permute.xlu0 %20
    %vm22 = vcmask 1032128
    %23 = vst.msk [vmem:[#allocation0] sm:$0x1] %vm22, %v21
    %s24 = scalar_lea.vmem %s0, 19
    %v25 = vld [vmem:[%s24] sm:$0x1]
    %26 = vrot.lane.b32.xlu0 %v25, 114
    %v27 = vpop.permute.xlu0 %26
    %vm28 = vcmask 982928
    %29 = vst.msk [vmem:[#allocation0] sm:$0x1] %vm28, %v27
    %s30 = scalar_lea.vmem %s0, 18
    %v31 = vld [vmem:[%s30] sm:$0x1]
    %32 = vrot.lane.b32.xlu0 %v31, 108
    %v33 = vpop.permute.xlu0 %32
    %vm34 = vcmask 933728
    %35 = vst.msk [vmem:[#allocation0] sm:$0x1] %vm34, %v33
    %s36 = scalar_lea.vmem %s0, 17
    %v37 = vld [vmem:[%s36] sm:$0x1]
    %38 = vrot.lane.b32.xlu0 %v37, 102
    %v39 = vpop.permute.xlu0 %38
    %vm40 = vcmask 884528
    %41 = vst.msk [vmem:[#allocation0] sm:$0x1] %vm40, %v39
    %s42 = scalar_lea.vmem %s0, 16
    %v43 = vld [vmem:[%s42] sm:$0x1]
    %44 = vrot.lane.b32.xlu0 %v43, 96
    %v45 = vpop.permute.xlu0 %44
    %vm46 = vcmask 835328
    %47 = vst.msk [vmem:[#allocation0] sm:$0x1] %vm46, %v45
    %s48 = scalar_lea.vmem %s0, 15
    %v49 = vld [vmem:[%s48] sm:$0x1]
    %50 = vrot.lane.b32.xlu0 %v49, 90
    %v51 = vpop.permute.xlu0 %50
    %vm52 = vcmask 786128
    %53 = vst.msk [vmem:[#allocation0] sm:$0x1] %vm52, %v51
    %s54 = scalar_lea.vmem %s0, 14
    %v55 = vld [vmem:[%s54] sm:$0x1]
    %56 = vrot.lane.b32.xlu0 %v55, 84
    %v57 = vpop.permute.xlu0 %56
    %vm58 = vcmask 736928
    %59 = vst.msk [vmem:[#allocation0] sm:$0x1] %vm58, %v57
    %s60 = scalar_lea.vmem %s0, 13
    %v61 = vld [vmem:[%s60] sm:$0x1]
    %62 = vrot.lane.b32.xlu0 %v61, 78
    %v63 = vpop.permute.xlu0 %62
    %vm64 = vcmask 687728
    %65 = vst.msk [vmem:[#allocation0] sm:$0x1] %vm64, %v63
    %s66 = scalar_lea.vmem %s0, 12
    %v67 = vld [vmem:[%s66] sm:$0x1]
    %68 = vrot.lane.b32.xlu0 %v67, 72
    %v69 = vpop.permute.xlu0 %68
    %vm70 = vcmask 638528
    %71 = vst.msk [vmem:[#allocation0] sm:$0x1] %vm70, %v69
    %s72 = scalar_lea.vmem %s0, 11
    %v73 = vld [vmem:[%s72] sm:$0x1]
    %74 = vrot.lane.b32.xlu0 %v73, 66
    %v75 = vpop.permute.xlu0 %74
    %vm76 = vcmask 589328
    %77 = vst.msk [vmem:[#allocation0] sm:$0x1] %vm76, %v75
    %s78 = scalar_lea.vmem %s0, 10
    %v79 = vld [vmem:[%s78] sm:$0x1]
    %80 = vrot.lane.b32.xlu0 %v79, 60
    %v81 = vpop.permute.xlu0 %80
    %vm82 = vcmask 540128
    %83 = vst.msk [vmem:[#allocation0] sm:$0x1] %vm82, %v81
    %s84 = scalar_lea.vmem %s0, 9
    %v85 = vld [vmem:[%s84] sm:$0x1]
    %86 = vrot.lane.b32.xlu0 %v85, 54
    %v87 = vpop.permute.xlu0 %86
    %vm88 = vcmask 490928
    %89 = vst.msk [vmem:[#allocation0] sm:$0x1] %vm88, %v87
    %s90 = scalar_lea.vmem %s0, 8
    %v91 = vld [vmem:[%s90] sm:$0x1]
    %92 = vrot.lane.b32.xlu0 %v91, 48
    %v93 = vpop.permute.xlu0 %92
    %vm94 = vcmask 441728
    %95 = vst.msk [vmem:[#allocation0] sm:$0x1] %vm94, %v93
    %s96 = scalar_lea.vmem %s0, 29
    %v97 = vld [vmem:[%s96] sm:$0x1]
    %98 = vrot.lane.b32.xlu0 %v97, 46
    %v99 = vpop.permute.xlu0 %98
    %vm100 = vcmask 425328
    %s101 = scalar_lea.vmem [#allocation0], 8
    %102 = vst.msk [vmem:[%s101] sm:$0x1] %vm100, %v99
    %s103 = scalar_lea.vmem %s0, 7
    %v104 = vld [vmem:[%s103] sm:$0x1]
    %105 = vrot.lane.b32.xlu0 %v104, 42
    %v106 = vpop.permute.xlu0 %105
    %vm107 = vcmask 392528
    %108 = vst.msk [vmem:[#allocation0] sm:$0x1] %vm107, %v106
    %s109 = scalar_lea.vmem %s0, 28
    %v110 = vld [vmem:[%s109] sm:$0x1]
    %111 = vrot.lane.b32.xlu0 %v110, 40
    %v112 = vpop.permute.xlu0 %111
    %vm113 = vcmask 376128
    %s114 = scalar_lea.vmem [#allocation0], 8
    %115 = vst.msk [vmem:[%s114] sm:$0x1] %vm113, %v112
    %s116 = scalar_lea.vmem %s0, 6
    %v117 = vld [vmem:[%s116] sm:$0x1]
    %118 = vrot.lane.b32.xlu0 %v117, 36
    %v119 = vpop.permute.xlu0 %118
    %vm120 = vcmask 343328
    %121 = vst.msk [vmem:[#allocation0] sm:$0x1] %vm120, %v119
    %s122 = scalar_lea.vmem %s0, 27
    %v123 = vld [vmem:[%s122] sm:$0x1]
    %124 = vrot.lane.b32.xlu0 %v123, 34
    %v125 = vpop.permute.xlu0 %124
    %vm126 = vcmask 326928
    %s127 = scalar_lea.vmem [#allocation0], 8
    %128 = vst.msk [vmem:[%s127] sm:$0x1] %vm126, %v125
    %s129 = scalar_lea.vmem %s0, 5
    %v130 = vld [vmem:[%s129] sm:$0x1]
    %131 = vrot.lane.b32.xlu0 %v130, 30
    %v132 = vpop.permute.xlu0 %131
    %vm133 = vcmask 294128
    %134 = vst.msk [vmem:[#allocation0] sm:$0x1] %vm133, %v132
    %s135 = scalar_lea.vmem %s0, 26
    %v136 = vld [vmem:[%s135] sm:$0x1]
    %137 = vrot.lane.b32.xlu0 %v136, 28
    %v138 = vpop.permute.xlu0 %137
    %vm139 = vcmask 277728
    %s140 = scalar_lea.vmem [#allocation0], 8
    %141 = vst.msk [vmem:[%s140] sm:$0x1] %vm139, %v138
    %s142 = scalar_lea.vmem %s0, 4
    %v143 = vld [vmem:[%s142] sm:$0x1]
    %144 = vrot.lane.b32.xlu0 %v143, 24
    %v145 = vpop.permute.xlu0 %144
    %vm146 = vcmask 244928
    %147 = vst.msk [vmem:[#allocation0] sm:$0x1] %vm146, %v145
    %s148 = scalar_lea.vmem %s0, 25
    %v149 = vld [vmem:[%s148] sm:$0x1]
    %150 = vrot.lane.b32.xlu0 %v149, 22
    %v151 = vpop.permute.xlu0 %150
    %vm152 = vcmask 228528
    %s153 = scalar_lea.vmem [#allocation0], 8
    %154 = vst.msk [vmem:[%s153] sm:$0x1] %vm152, %v151
    %s155 = scalar_lea.vmem %s0, 3
    %v156 = vld [vmem:[%s155] sm:$0x1]
    %157 = vrot.lane.b32.xlu0 %v156, 18
    %v158 = vpop.permute.xlu0 %157
    %vm159 = vcmask 195728
    %160 = vst.msk [vmem:[#allocation0] sm:$0x1] %vm159, %v158
    %s161 = scalar_lea.vmem %s0, 24
    %v162 = vld [vmem:[%s161] sm:$0x1]
    %163 = vrot.lane.b32.xlu0 %v162, 16
    %v164 = vpop.permute.xlu0 %163
    %vm165 = vcmask 179328
    %s166 = scalar_lea.vmem [#allocation0], 8
    %167 = vst.msk [vmem:[%s166] sm:$0x1] %vm165, %v164
    %s168 = scalar_lea.vmem %s0, 2
    %v169 = vld [vmem:[%s168] sm:$0x1]
    %170 = vrot.lane.b32.xlu0 %v169, 12
    %v171 = vpop.permute.xlu0 %170
    %vm172 = vcmask 146528
    %173 = vst.msk [vmem:[#allocation0] sm:$0x1] %vm172, %v171
    %s174 = scalar_lea.vmem %s0, 23
    %v175 = vld [vmem:[%s174] sm:$0x1]
    %176 = vrot.lane.b32.xlu0 %v175, 10
    %v177 = vpop.permute.xlu0 %176
    %vm178 = vcmask 130128
    %s179 = scalar_lea.vmem [#allocation0], 8
    %180 = vst.msk [vmem:[%s179] sm:$0x1] %vm178, %v177
    %s181 = scalar_lea.vmem %s0, 1
    %v182 = vld [vmem:[%s181] sm:$0x1]
    %183 = vrot.lane.b32.xlu0 %v182, 6
    %v184 = vpop.permute.xlu0 %183
    %vm185 = vcmask 97328
    %186 = vst.msk [vmem:[#allocation0] sm:$0x1] %vm185, %v184
    %s187 = scalar_lea.vmem %s0, 22
    %v188 = vld [vmem:[%s187] sm:$0x1]
    %189 = vrot.lane.b32.xlu0 %v188, 4
    %v190 = vpop.permute.xlu0 %189
    %vm191 = vcmask 80928
    %s192 = scalar_lea.vmem [#allocation0], 8
    %193 = vst.msk [vmem:[%s192] sm:$0x1] %vm191, %v190
    %s195 = ssub.s32 2, 1
    %v196 = vld [vmem:[#allocation0] sm:%s195]
    %s198 = ssub.s32 2, 1
    %199 = vst [vmem:[%s1] sm:%s198] %v196
    %s200 = scalar_lea.vmem [#allocation0], 8
    %v201 = vld [vmem:[%s200] sm:%s195]
    %s203 = ssub.s32 2, 1
    %s204 = scalar_lea.vmem %s1, 1
    %205 = vst [vmem:[%s204] sm:%s203] %v201

// kernel: tile.18
$region0: #{tile.18}
  #allocation0 [shape = 's32[1]{0}', space=sflag, size = 0x4, scoped, tag = 'scoped memory for tile.18']
  %s0 = inlined_call_operand.vmem [shape: f32[16], index: 0, kind: input, shape index: {}]
  %s1 = inlined_call_operand.vmem [shape: f32[13,16], index: 1, kind: output, shape index: {}]
  // Predicated region
  $region2: #{tile.18} parent=0 // pred_check
    _
  $region3: #{tile.18} parent=0 // pred_check_branch
    %3 = sbr.rel (0) target = $region5
  $region4: #{tile.18} parent=0 // pred_region
    _
  $region5: #{tile.18} parent=0 // pred_fallthru
    _
  %v4 = vld [vmem:[%s0] ss:$0 sm:$0xff]
  %5 = vst [vmem:[%s1] sm:$0xff] %v4
  %s6 = scalar_lea.vmem %s1, 8
  %7 = vst [vmem:[%s6] sm:$0xff] %v4

// kernel: tile.19
$region0: #{tile.19}
  %s0 = inlined_call_operand.vmem [shape: f32[13,16], index: 0, kind: input, shape index: {}]
  %s1 = inlined_call_operand.vmem [shape: f32[1,208], index: 1, kind: output, shape index: {}]
  $region1: #{tile.19} parent=0
    #allocation0 [shape = 'u8[8192]{0}', space=vmem, size = 0x2000, scoped, tag = 'scoped mem for output reshape']
    %s2 = smov 3
    %v3 = vld [vmem:[%s0] ss:$8 sm:%s2]
    %vm4 = vcmask 130048
    %5 = vst.msk [vmem:[#allocation0] ss:$8 sm:$0x3] %vm4, %v3
    %s6 = scalar_lea.vmem %s0, 7
    %v7 = vld [vmem:[%s6] sm:$0x1]
    %8 = vrot.lane.b32.xlu0 %v7, 112
    %v9 = vpop.permute.xlu0 %8
    %vm10 = vcmask 1048448
    %11 = vst.msk [vmem:[#allocation0] sm:$0x1] %vm10, %v9
    %s12 = scalar_lea.vmem %s0, 6
    %v13 = vld [vmem:[%s12] sm:$0x1]
    %14 = vrot.lane.b32.xlu0 %v13, 96
    %v15 = vpop.permute.xlu0 %14
    %vm16 = vcmask 917248
    %17 = vst.msk [vmem:[#allocation0] sm:$0x1] %vm16, %v15
    %s18 = scalar_lea.vmem %s0, 5
    %v19 = vld [vmem:[%s18] sm:$0x1]
    %20 = vrot.lane.b32.xlu0 %v19, 80
    %v21 = vpop.permute.xlu0 %20
    %vm22 = vcmask 786048
    %23 = vst.msk [vmem:[#allocation0] sm:$0x1] %vm22, %v21
    %s24 = scalar_lea.vmem %s0, 4
    %s25 = smov 3
    %v26 = vld [vmem:[%s24] ss:$8 sm:%s25]
    %27 = vrot.lane.b32.xlu0 %v26, 64
    %v28 = vpop.permute.xlu0 %27
    %vm29 = vcmask 654848
    %30 = vst.msk [vmem:[#allocation0] ss:$8 sm:$0x3] %vm29, %v28
    %s31 = scalar_lea.vmem %s0, 3
    %s32 = smov 3
    %v33 = vld [vmem:[%s31] ss:$8 sm:%s32]
    %34 = vrot.lane.b32.xlu0 %v33, 48
    %v35 = vpop.permute.xlu0 %34
    %vm36 = vcmask 523648
    %37 = vst.msk [vmem:[#allocation0] ss:$8 sm:$0x3] %vm36, %v35
    %s38 = scalar_lea.vmem %s0, 2
    %s39 = smov 3
    %v40 = vld [vmem:[%s38] ss:$8 sm:%s39]
    %41 = vrot.lane.b32.xlu0 %v40, 32
    %v42 = vpop.permute.xlu0 %41
    %vm43 = vcmask 392448
    %44 = vst.msk [vmem:[#allocation0] ss:$8 sm:$0x3] %vm43, %v42
    %s45 = scalar_lea.vmem %s0, 1
    %s46 = smov 3
    %v47 = vld [vmem:[%s45] ss:$8 sm:%s46]
    %48 = vrot.lane.b32.xlu0 %v47, 16
    %v49 = vpop.permute.xlu0 %48
    %vm50 = vcmask 261248
    %51 = vst.msk [vmem:[#allocation0] ss:$8 sm:$0x3] %vm50, %v49
    %s53 = ssub.s32 2, 1
    %v54 = vld [vmem:[#allocation0] sm:%s53]
    %s56 = ssub.s32 2, 1
    %57 = vst [vmem:[%s1] sm:%s56] %v54
    %s58 = scalar_lea.vmem [#allocation0], 8
    %v59 = vld [vmem:[%s58] sm:%s53]
    %s61 = ssub.s32 2, 1
    %s62 = scalar_lea.vmem %s1, 1
    %63 = vst [vmem:[%s62] sm:%s61] %v59

// kernel: net_forward.1
$region0: #{net_forward.1}
  #allocation0 [shape = 'u32[]', space=smem, size = 0x4, offset = 0x4, fixed_abs, tag = 'smem constant byte address 0x4 - core index']
  #allocation1 [shape = 'u32[72,128]{1,0:T(1,128)}', space=vmem, size = 0x9000, scoped, tag = 'internal scratch']
  #allocation2 [shape = 'f32[15,90]{1,0:T(8,128)}', space=vmem, size = 0x2000, scoped, tag = 'scratch operand']
  #allocation3 [shape = 'f32[6,96]{1,0:T(8,128)}', space=vmem, size = 0x1000, scoped, tag = 'scratch operand']
  %s0 = inlined_call_operand.vmem [shape: f32[2,32,32], index: 0, kind: input, shape index: {}]
  %s1 = inlined_call_operand.vmem [shape: f32[3,32,180], index: 1, kind: input, shape index: {}]
  %s2 = inlined_call_operand.vmem [shape: f32[1,180], index: 2, kind: input, shape index: {}]
  %s3 = inlined_call_operand.vmem [shape: f32[2,180,90], index: 3, kind: input, shape index: {}]
  %s4 = inlined_call_operand.vmem [shape: f32[2,15,30], index: 4, kind: input, shape index: {}]
  %s5 = inlined_call_operand.vmem [shape: f32[3,90,208], index: 5, kind: input, shape index: {}]
  %s6 = inlined_call_operand.vmem [shape: f32[1,208], index: 6, kind: input, shape index: {}]
  %s7 = inlined_call_operand.vmem [shape: f32[2,208,96], index: 7, kind: input, shape index: {}]
  %s8 = inlined_call_operand.vmem [shape: f32[2,6,13], index: 8, kind: input, shape index: {}]
  %s9 = inlined_call_operand.vmem [shape: f32[6,96,120], index: 9, kind: input, shape index: {}]
  %s10 = inlined_call_operand.vmem [shape: f32[1,120], index: 10, kind: input, shape index: {}]
  %s11 = inlined_call_operand.vmem [shape: f32[120,84], index: 11, kind: input, shape index: {}]
  %s12 = inlined_call_operand.vmem [shape: f32[1,84], index: 12, kind: input, shape index: {}]
  %s13 = inlined_call_operand.vmem [shape: f32[84,10], index: 13, kind: input, shape index: {}]
  %s14 = inlined_call_operand.vmem [shape: f32[1,10], index: 14, kind: input, shape index: {}]
  %s15 = inlined_call_operand.hbm [shape: f32[2,1,10], index: 15, kind: output, shape index: {}]
  %s16 = sld [smem:[#allocation0]]
  $region93: #{net_forward.1} parent=0
    _
  %s18 = ssub.s32 1, %s16
  %s19 = scalar_select 0, %s18, %s16
  $region1: #{net_forward.1} parent=0
    #allocation4 [shape = 'u8[1024]{0}', space=vmem, size = 0x400, scoped, tag = 'output window, operand 0']
    #allocation5 [shape = 's32[2]{0}', space=sflag, size = 0x8, scoped, tag = 'scoped memory for net_forward.1']
    %20 = vsyncpa [#allocation5], 0
    %s21 = scalar_lea.sflag [#allocation5], 1
    %22 = vsyncpa %s21, 0
    loop: start=0, step=1, limit=4
    $region2: #{net_forward.1} parent=1 // loop_pre_header
      _
    $region3: #{net_forward.1} parent=1 // loop_header
      %s24 = sphi 0, %s28
      %p25 = scmp.ge.s32.totalorder %s24, 4
      %s34 = sphi 0, %s36
      %s37 = sphi 0, %s34
      %s38 = sphi 0, %s37
      %s54 = sphi 0, %s38
      %s58 = sphi 0, %s58
      %s60 = sphi 0, %s58
      %s61 = sphi 0, %s60
      %s75 = sphi 0, %s61
      %s79 = sphi 0, %s79
      %s81 = sphi 0, %s79
      %s82 = sphi 0, %s81
      %s96 = sphi 0, %s82
      %s100 = sphi 0, %s100
      %s102 = sphi 0, %s100
      %s103 = sphi 0, %s102
      %s117 = sphi 0, %s103
      %s121 = sphi 0, %s121
      %s123 = sphi 0, %s121
      %s124 = sphi 0, %s123
      %s138 = sphi 0, %s124
      %s142 = sphi 0, %s142
      %s144 = sphi 0, %s142
      %s145 = sphi 0, %s144
      %s159 = sphi 0, %s145
      %s163 = sphi 0, %s163
      %s165 = sphi 0, %s163
      %s166 = sphi 0, %s165
      %s180 = sphi 0, %s166
      %s184 = sphi 0, %s184
      %s186 = sphi 0, %s184
      %s187 = sphi 0, %s186
      %s201 = sphi 0, %s187
      %s205 = sphi 0, %s205
      %s207 = sphi 0, %s205
      %s208 = sphi 0, %s207
      %s222 = sphi 0, %s208
      %s226 = sphi 0, %s226
      %s228 = sphi 0, %s226
      %s229 = sphi 0, %s228
      %s243 = sphi 0, %s229
      %s247 = sphi 0, %s247
      %s249 = sphi 0, %s247
      %s250 = sphi 0, %s249
      %s264 = sphi 0, %s250
      %s268 = sphi 0, %s268
      %s270 = sphi 0, %s268
      %s271 = sphi 0, %s270
      %s285 = sphi 0, %s271
      %s289 = sphi 0, %s289
      %s291 = sphi 0, %s289
      %s292 = sphi 0, %s291
      %s306 = sphi 0, %s292
      %s310 = sphi 0, %s310
      %s312 = sphi 0, %s310
      %s313 = sphi 0, %s312
      %s327 = sphi 0, %s313
      %s331 = sphi 0, %s331
      %s333 = sphi 0, %s331
      %s334 = sphi 0, %s333
      %s348 = sphi 0, %s334
      %s354 = sphi 0, %s356
      %s357 = sphi 0, %s354
      %s358 = sphi 0, %s357
      %s374 = sphi 0, %s358
    $region4: #{net_forward.1} parent=1 // loop_header_branch
      %27 = sbr.rel (%p25) target = $region8
    $region5: #{net_forward.1} parent=1 // loop_body
      %s29 = ssub.s32 %s24, 1
      %s30 = ssub.s32 %s24, 2
      %s31 = sadd.s32 %s24, 1
      %s32 = ssub.s32 %s24, %s31
      %p33 = scmp.eq.s32.totalorder %s32, 0
      %s35 = sadd.s32 %s34, 1
      %s36 = scalar_select %p33, %s34, %s35
      %p39 = pneg %p33
      %p40 = scmp.eq.s32.totalorder %s24, 1
      %p41 = por %p39, %p40
      %p42 = scmp.ne.s32.totalorder %s34, %s37
      %p43 = scmp.eq.s32.totalorder %s24, 0
      %p44 = por %p42, %p43
      %p45 = scmp.ne.s32.totalorder %s34, %s37
      %p46 = scmp.eq.s32.totalorder %s29, 1
      %p47 = por %p45, %p46
      %p48 = scmp.ne.s32.totalorder %s37, %s38
      %p49 = scmp.eq.s32.totalorder %s29, 0
      %p50 = por %p48, %p49
      %p51 = scmp.ne.s32.totalorder %s37, %s38
      %p52 = scmp.eq.s32.totalorder %s30, 1
      %p53 = por %p51, %p52
      %p55 = scmp.ne.s32.totalorder %s38, %s54
      %p56 = scmp.eq.s32.totalorder %s30, 0
      %p57 = por %p55, %p56
      %s59 = sadd.s32 %s58, 1
      %p62 = scmp.eq.s32.totalorder %s24, 1
      %p63 = scmp.ne.s32.totalorder %s58, %s60
      %p64 = scmp.eq.s32.totalorder %s24, 0
      %p65 = por %p63, %p64
      %p66 = scmp.ne.s32.totalorder %s58, %s60
      %p67 = scmp.eq.s32.totalorder %s29, 1
      %p68 = por %p66, %p67
      %p69 = scmp.ne.s32.totalorder %s60, %s61
      %p70 = scmp.eq.s32.totalorder %s29, 0
      %p71 = por %p69, %p70
      %p72 = scmp.ne.s32.totalorder %s60, %s61
      %p73 = scmp.eq.s32.totalorder %s30, 1
      %p74 = por %p72, %p73
      %p76 = scmp.ne.s32.totalorder %s61, %s75
      %p77 = scmp.eq.s32.totalorder %s30, 0
      %p78 = por %p76, %p77
      %s80 = sadd.s32 %s79, 1
      %p83 = scmp.eq.s32.totalorder %s24, 1
      %p84 = scmp.ne.s32.totalorder %s79, %s81
      %p85 = scmp.eq.s32.totalorder %s24, 0
      %p86 = por %p84, %p85
      %p87 = scmp.ne.s32.totalorder %s79, %s81
      %p88 = scmp.eq.s32.totalorder %s29, 1
      %p89 = por %p87, %p88
      %p90 = scmp.ne.s32.totalorder %s81, %s82
      %p91 = scmp.eq.s32.totalorder %s29, 0
      %p92 = por %p90, %p91
      %p93 = scmp.ne.s32.totalorder %s81, %s82
      %p94 = scmp.eq.s32.totalorder %s30, 1
      %p95 = por %p93, %p94
      %p97 = scmp.ne.s32.totalorder %s82, %s96
      %p98 = scmp.eq.s32.totalorder %s30, 0
      %p99 = por %p97, %p98
      %s101 = sadd.s32 %s100, 1
      %p104 = scmp.eq.s32.totalorder %s24, 1
      %p105 = scmp.ne.s32.totalorder %s100, %s102
      %p106 = scmp.eq.s32.totalorder %s24, 0
      %p107 = por %p105, %p106
      %p108 = scmp.ne.s32.totalorder %s100, %s102
      %p109 = scmp.eq.s32.totalorder %s29, 1
      %p110 = por %p108, %p109
      %p111 = scmp.ne.s32.totalorder %s102, %s103
      %p112 = scmp.eq.s32.totalorder %s29, 0
      %p113 = por %p111, %p112
      %p114 = scmp.ne.s32.totalorder %s102, %s103
      %p115 = scmp.eq.s32.totalorder %s30, 1
      %p116 = por %p114, %p115
      %p118 = scmp.ne.s32.totalorder %s103, %s117
      %p119 = scmp.eq.s32.totalorder %s30, 0
      %p120 = por %p118, %p119
      %s122 = sadd.s32 %s121, 1
      %p125 = scmp.eq.s32.totalorder %s24, 1
      %p126 = scmp.ne.s32.totalorder %s121, %s123
      %p127 = scmp.eq.s32.totalorder %s24, 0
      %p128 = por %p126, %p127
      %p129 = scmp.ne.s32.totalorder %s121, %s123
      %p130 = scmp.eq.s32.totalorder %s29, 1
      %p131 = por %p129, %p130
      %p132 = scmp.ne.s32.totalorder %s123, %s124
      %p133 = scmp.eq.s32.totalorder %s29, 0
      %p134 = por %p132, %p133
      %p135 = scmp.ne.s32.totalorder %s123, %s124
      %p136 = scmp.eq.s32.totalorder %s30, 1
      %p137 = por %p135, %p136
      %p139 = scmp.ne.s32.totalorder %s124, %s138
      %p140 = scmp.eq.s32.totalorder %s30, 0
      %p141 = por %p139, %p140
      %s143 = sadd.s32 %s142, 1
      %p146 = scmp.eq.s32.totalorder %s24, 1
      %p147 = scmp.ne.s32.totalorder %s142, %s144
      %p148 = scmp.eq.s32.totalorder %s24, 0
      %p149 = por %p147, %p148
      %p150 = scmp.ne.s32.totalorder %s142, %s144
      %p151 = scmp.eq.s32.totalorder %s29, 1
      %p152 = por %p150, %p151
      %p153 = scmp.ne.s32.totalorder %s144, %s145
      %p154 = scmp.eq.s32.totalorder %s29, 0
      %p155 = por %p153, %p154
      %p156 = scmp.ne.s32.totalorder %s144, %s145
      %p157 = scmp.eq.s32.totalorder %s30, 1
      %p158 = por %p156, %p157
      %p160 = scmp.ne.s32.totalorder %s145, %s159
      %p161 = scmp.eq.s32.totalorder %s30, 0
      %p162 = por %p160, %p161
      %s164 = sadd.s32 %s163, 1
      %p167 = scmp.eq.s32.totalorder %s24, 1
      %p168 = scmp.ne.s32.totalorder %s163, %s165
      %p169 = scmp.eq.s32.totalorder %s24, 0
      %p170 = por %p168, %p169
      %p171 = scmp.ne.s32.totalorder %s163, %s165
      %p172 = scmp.eq.s32.totalorder %s29, 1
      %p173 = por %p171, %p172
      %p174 = scmp.ne.s32.totalorder %s165, %s166
      %p175 = scmp.eq.s32.totalorder %s29, 0
      %p176 = por %p174, %p175
      %p177 = scmp.ne.s32.totalorder %s165, %s166
      %p178 = scmp.eq.s32.totalorder %s30, 1
      %p179 = por %p177, %p178
      %p181 = scmp.ne.s32.totalorder %s166, %s180
      %p182 = scmp.eq.s32.totalorder %s30, 0
      %p183 = por %p181, %p182
      %s185 = sadd.s32 %s184, 1
      %p188 = scmp.eq.s32.totalorder %s24, 1
      %p189 = scmp.ne.s32.totalorder %s184, %s186
      %p190 = scmp.eq.s32.totalorder %s24, 0
      %p191 = por %p189, %p190
      %p192 = scmp.ne.s32.totalorder %s184, %s186
      %p193 = scmp.eq.s32.totalorder %s29, 1
      %p194 = por %p192, %p193
      %p195 = scmp.ne.s32.totalorder %s186, %s187
      %p196 = scmp.eq.s32.totalorder %s29, 0
      %p197 = por %p195, %p196
      %p198 = scmp.ne.s32.totalorder %s186, %s187
      %p199 = scmp.eq.s32.totalorder %s30, 1
      %p200 = por %p198, %p199
      %p202 = scmp.ne.s32.totalorder %s187, %s201
      %p203 = scmp.eq.s32.totalorder %s30, 0
      %p204 = por %p202, %p203
      %s206 = sadd.s32 %s205, 1
      %p209 = scmp.eq.s32.totalorder %s24, 1
      %p210 = scmp.ne.s32.totalorder %s205, %s207
      %p211 = scmp.eq.s32.totalorder %s24, 0
      %p212 = por %p210, %p211
      %p213 = scmp.ne.s32.totalorder %s205, %s207
      %p214 = scmp.eq.s32.totalorder %s29, 1
      %p215 = por %p213, %p214
      %p216 = scmp.ne.s32.totalorder %s207, %s208
      %p217 = scmp.eq.s32.totalorder %s29, 0
      %p218 = por %p216, %p217
      %p219 = scmp.ne.s32.totalorder %s207, %s208
      %p220 = scmp.eq.s32.totalorder %s30, 1
      %p221 = por %p219, %p220
      %p223 = scmp.ne.s32.totalorder %s208, %s222
      %p224 = scmp.eq.s32.totalorder %s30, 0
      %p225 = por %p223, %p224
      %s227 = sadd.s32 %s226, 1
      %p230 = scmp.eq.s32.totalorder %s24, 1
      %p231 = scmp.ne.s32.totalorder %s226, %s228
      %p232 = scmp.eq.s32.totalorder %s24, 0
      %p233 = por %p231, %p232
      %p234 = scmp.ne.s32.totalorder %s226, %s228
      %p235 = scmp.eq.s32.totalorder %s29, 1
      %p236 = por %p234, %p235
      %p237 = scmp.ne.s32.totalorder %s228, %s229
      %p238 = scmp.eq.s32.totalorder %s29, 0
      %p239 = por %p237, %p238
      %p240 = scmp.ne.s32.totalorder %s228, %s229
      %p241 = scmp.eq.s32.totalorder %s30, 1
      %p242 = por %p240, %p241
      %p244 = scmp.ne.s32.totalorder %s229, %s243
      %p245 = scmp.eq.s32.totalorder %s30, 0
      %p246 = por %p244, %p245
      %s248 = sadd.s32 %s247, 1
      %p251 = scmp.eq.s32.totalorder %s24, 1
      %p252 = scmp.ne.s32.totalorder %s247, %s249
      %p253 = scmp.eq.s32.totalorder %s24, 0
      %p254 = por %p252, %p253
      %p255 = scmp.ne.s32.totalorder %s247, %s249
      %p256 = scmp.eq.s32.totalorder %s29, 1
      %p257 = por %p255, %p256
      %p258 = scmp.ne.s32.totalorder %s249, %s250
      %p259 = scmp.eq.s32.totalorder %s29, 0
      %p260 = por %p258, %p259
      %p261 = scmp.ne.s32.totalorder %s249, %s250
      %p262 = scmp.eq.s32.totalorder %s30, 1
      %p263 = por %p261, %p262
      %p265 = scmp.ne.s32.totalorder %s250, %s264
      %p266 = scmp.eq.s32.totalorder %s30, 0
      %p267 = por %p265, %p266
      %s269 = sadd.s32 %s268, 1
      %p272 = scmp.eq.s32.totalorder %s24, 1
      %p273 = scmp.ne.s32.totalorder %s268, %s270
      %p274 = scmp.eq.s32.totalorder %s24, 0
      %p275 = por %p273, %p274
      %p276 = scmp.ne.s32.totalorder %s268, %s270
      %p277 = scmp.eq.s32.totalorder %s29, 1
      %p278 = por %p276, %p277
      %p279 = scmp.ne.s32.totalorder %s270, %s271
      %p280 = scmp.eq.s32.totalorder %s29, 0
      %p281 = por %p279, %p280
      %p282 = scmp.ne.s32.totalorder %s270, %s271
      %p283 = scmp.eq.s32.totalorder %s30, 1
      %p284 = por %p282, %p283
      %p286 = scmp.ne.s32.totalorder %s271, %s285
      %p287 = scmp.eq.s32.totalorder %s30, 0
      %p288 = por %p286, %p287
      %s290 = sadd.s32 %s289, 1
      %p293 = scmp.eq.s32.totalorder %s24, 1
      %p294 = scmp.ne.s32.totalorder %s289, %s291
      %p295 = scmp.eq.s32.totalorder %s24, 0
      %p296 = por %p294, %p295
      %p297 = scmp.ne.s32.totalorder %s289, %s291
      %p298 = scmp.eq.s32.totalorder %s29, 1
      %p299 = por %p297, %p298
      %p300 = scmp.ne.s32.totalorder %s291, %s292
      %p301 = scmp.eq.s32.totalorder %s29, 0
      %p302 = por %p300, %p301
      %p303 = scmp.ne.s32.totalorder %s291, %s292
      %p304 = scmp.eq.s32.totalorder %s30, 1
      %p305 = por %p303, %p304
      %p307 = scmp.ne.s32.totalorder %s292, %s306
      %p308 = scmp.eq.s32.totalorder %s30, 0
      %p309 = por %p307, %p308
      %s311 = sadd.s32 %s310, 1
      %p314 = scmp.eq.s32.totalorder %s24, 1
      %p315 = scmp.ne.s32.totalorder %s310, %s312
      %p316 = scmp.eq.s32.totalorder %s24, 0
      %p317 = por %p315, %p316
      %p318 = scmp.ne.s32.totalorder %s310, %s312
      %p319 = scmp.eq.s32.totalorder %s29, 1
      %p320 = por %p318, %p319
      %p321 = scmp.ne.s32.totalorder %s312, %s313
      %p322 = scmp.eq.s32.totalorder %s29, 0
      %p323 = por %p321, %p322
      %p324 = scmp.ne.s32.totalorder %s312, %s313
      %p325 = scmp.eq.s32.totalorder %s30, 1
      %p326 = por %p324, %p325
      %p328 = scmp.ne.s32.totalorder %s313, %s327
      %p329 = scmp.eq.s32.totalorder %s30, 0
      %p330 = por %p328, %p329
      %s332 = sadd.s32 %s331, 1
      %p335 = scmp.eq.s32.totalorder %s24, 1
      %p336 = scmp.ne.s32.totalorder %s331, %s333
      %p337 = scmp.eq.s32.totalorder %s24, 0
      %p338 = por %p336, %p337
      %p339 = scmp.ne.s32.totalorder %s331, %s333
      %p340 = scmp.eq.s32.totalorder %s29, 1
      %p341 = por %p339, %p340
      %p342 = scmp.ne.s32.totalorder %s333, %s334
      %p343 = scmp.eq.s32.totalorder %s29, 0
      %p344 = por %p342, %p343
      %p345 = scmp.ne.s32.totalorder %s333, %s334
      %p346 = scmp.eq.s32.totalorder %s30, 1
      %p347 = por %p345, %p346
      %p349 = scmp.ne.s32.totalorder %s334, %s348
      %p350 = scmp.eq.s32.totalorder %s30, 0
      %p351 = por %p349, %p350
      %s352 = ssub.s32 %s24, %s31
      %p353 = scmp.eq.s32.totalorder %s352, 0
      %s355 = sadd.s32 %s354, 1
      %s356 = scalar_select %p353, %s354, %s355
      %p359 = pneg %p353
      %p360 = scmp.eq.s32.totalorder %s24, 1
      %p361 = por %p359, %p360
      %p362 = scmp.ne.s32.totalorder %s354, %s357
      %p363 = scmp.eq.s32.totalorder %s24, 0
      %p364 = por %p362, %p363
      %p365 = scmp.ne.s32.totalorder %s354, %s357
      %p366 = scmp.eq.s32.totalorder %s29, 1
      %p367 = por %p365, %p366
      %p368 = scmp.ne.s32.totalorder %s357, %s358
      %p369 = scmp.eq.s32.totalorder %s29, 0
      %p370 = por %p368, %p369
      %p371 = scmp.ne.s32.totalorder %s357, %s358
      %p372 = scmp.eq.s32.totalorder %s30, 1
      %p373 = por %p371, %p372
      %p375 = scmp.ne.s32.totalorder %s358, %s374
      %p376 = scmp.eq.s32.totalorder %s30, 0
      %p377 = por %p375, %p376
      %p378 = scmp.le.s32.totalorder 1, %s24
      %p379 = scmp.lt.s32.totalorder %s24, 3
      %p380 = pnand %p378, %p379
      %p381 = pneg %p380
      // Predicated region
      $region9: #{net_forward.1} parent=5 // pred_check
        _
      $region10: #{net_forward.1} parent=5 // pred_check_branch
        %383 = sbr.rel (%p380) target = $region12
      $region11: #{net_forward.1} parent=5 // pred_region
        %s384 = ssub.s32 %s24, 1
        // Predicated region
        $region13: #{net_forward.1} parent=11 // pred_check
          %p385 = pneg %p71
        $region14: #{net_forward.1} parent=11 // pred_check_branch
          %387 = sbr.rel (%p385) target = $region16
        $region15: #{net_forward.1} parent=11 // pred_region
          _
        $region16: #{net_forward.1} parent=11 // pred_fallthru
          _
        // Predicated region
        $region17: #{net_forward.1} parent=11 // pred_check
          %p388 = pneg %p92
        $region18: #{net_forward.1} parent=11 // pred_check_branch
          %390 = sbr.rel (%p388) target = $region20
        $region19: #{net_forward.1} parent=11 // pred_region
          _
        $region20: #{net_forward.1} parent=11 // pred_fallthru
          _
        // Predicated region
        $region21: #{net_forward.1} parent=11 // pred_check
          %p391 = pneg %p113
        $region22: #{net_forward.1} parent=11 // pred_check_branch
          %393 = sbr.rel (%p391) target = $region24
        $region23: #{net_forward.1} parent=11 // pred_region
          _
        $region24: #{net_forward.1} parent=11 // pred_fallthru
          _
        // Predicated region
        $region25: #{net_forward.1} parent=11 // pred_check
          %p394 = pneg %p134
        $region26: #{net_forward.1} parent=11 // pred_check_branch
          %396 = sbr.rel (%p394) target = $region28
        $region27: #{net_forward.1} parent=11 // pred_region
          _
        $region28: #{net_forward.1} parent=11 // pred_fallthru
          _
        // Predicated region
        $region29: #{net_forward.1} parent=11 // pred_check
          %p397 = pneg %p155
        $region30: #{net_forward.1} parent=11 // pred_check_branch
          %399 = sbr.rel (%p397) target = $region32
        $region31: #{net_forward.1} parent=11 // pred_region
          _
        $region32: #{net_forward.1} parent=11 // pred_fallthru
          _
        // Predicated region
        $region33: #{net_forward.1} parent=11 // pred_check
          %p400 = pneg %p176
        $region34: #{net_forward.1} parent=11 // pred_check_branch
          %402 = sbr.rel (%p400) target = $region36
        $region35: #{net_forward.1} parent=11 // pred_region
          _
        $region36: #{net_forward.1} parent=11 // pred_fallthru
          _
        // Predicated region
        $region37: #{net_forward.1} parent=11 // pred_check
          %p403 = pneg %p197
        $region38: #{net_forward.1} parent=11 // pred_check_branch
          %405 = sbr.rel (%p403) target = $region40
        $region39: #{net_forward.1} parent=11 // pred_region
          _
        $region40: #{net_forward.1} parent=11 // pred_fallthru
          _
        // Predicated region
        $region41: #{net_forward.1} parent=11 // pred_check
          %p406 = pneg %p218
        $region42: #{net_forward.1} parent=11 // pred_check_branch
          %408 = sbr.rel (%p406) target = $region44
        $region43: #{net_forward.1} parent=11 // pred_region
          _
        $region44: #{net_forward.1} parent=11 // pred_fallthru
          _
        // Predicated region
        $region45: #{net_forward.1} parent=11 // pred_check
          %p409 = pneg %p239
        $region46: #{net_forward.1} parent=11 // pred_check_branch
          %411 = sbr.rel (%p409) target = $region48
        $region47: #{net_forward.1} parent=11 // pred_region
          _
        $region48: #{net_forward.1} parent=11 // pred_fallthru
          _
        // Predicated region
        $region49: #{net_forward.1} parent=11 // pred_check
          %p412 = pneg %p260
        $region50: #{net_forward.1} parent=11 // pred_check_branch
          %414 = sbr.rel (%p412) target = $region52
        $region51: #{net_forward.1} parent=11 // pred_region
          _
        $region52: #{net_forward.1} parent=11 // pred_fallthru
          _
        // Predicated region
        $region53: #{net_forward.1} parent=11 // pred_check
          %p415 = pneg %p281
        $region54: #{net_forward.1} parent=11 // pred_check_branch
          %417 = sbr.rel (%p415) target = $region56
        $region55: #{net_forward.1} parent=11 // pred_region
          _
        $region56: #{net_forward.1} parent=11 // pred_fallthru
          _
        // Predicated region
        $region57: #{net_forward.1} parent=11 // pred_check
          %p418 = pneg %p302
        $region58: #{net_forward.1} parent=11 // pred_check_branch
          %420 = sbr.rel (%p418) target = $region60
        $region59: #{net_forward.1} parent=11 // pred_region
          _
        $region60: #{net_forward.1} parent=11 // pred_fallthru
          _
        // Predicated region
        $region61: #{net_forward.1} parent=11 // pred_check
          %p421 = pneg %p323
        $region62: #{net_forward.1} parent=11 // pred_check_branch
          %423 = sbr.rel (%p421) target = $region64
        $region63: #{net_forward.1} parent=11 // pred_region
          _
        $region64: #{net_forward.1} parent=11 // pred_fallthru
          _
        // Predicated region
        $region65: #{net_forward.1} parent=11 // pred_check
          %p424 = pneg %p344
        $region66: #{net_forward.1} parent=11 // pred_check_branch
          %426 = sbr.rel (%p424) target = $region68
        $region67: #{net_forward.1} parent=11 // pred_region
          _
        $region68: #{net_forward.1} parent=11 // pred_fallthru
          _
      $region12: #{net_forward.1} parent=5 // pred_fallthru
        _
      %p427 = scmp.lt.s32.totalorder %s24, 2
      // Predicated region
      $region69: #{net_forward.1} parent=5 // pred_check
        %p428 = pneg %p427
      $region70: #{net_forward.1} parent=5 // pred_check_branch
        %430 = sbr.rel (%p428) target = $region72
      $region71: #{net_forward.1} parent=5 // pred_region
        // Predicated region
        $region73: #{net_forward.1} parent=71 // pred_check
          %p431 = pneg %p44
        $region74: #{net_forward.1} parent=71 // pred_check_branch
          %433 = sbr.rel (%p431) target = $region76
        $region75: #{net_forward.1} parent=71 // pred_region
          %p434 = scmp.lt.s32.totalorder %s24, 1
          %s435 = scalar_select %p434, %s24, 1
          %s436 = smul.addr %s435, 4
          %s437 = smul.addr %s436, 8
          %s438 = scalar_lea.vmem %s0, %s437
        $region76: #{net_forward.1} parent=71 // pred_fallthru
          _
      $region72: #{net_forward.1} parent=5 // pred_fallthru
        _
      %p439 = scmp.le.s32.totalorder 1, %s24
      %p440 = scmp.lt.s32.totalorder %s24, 3
      %p441 = pnand %p439, %p440
      %p442 = pneg %p441
      // Predicated region
      $region77: #{net_forward.1} parent=5 // pred_check
        _
      $region78: #{net_forward.1} parent=5 // pred_check_branch
        %444 = sbr.rel (%p441) target = $region80
      $region79: #{net_forward.1} parent=5 // pred_region
        %s445 = ssub.s32 %s24, 1
        %p446 = scmp.lt.s32.totalorder %s29, 1
        %s447 = scalar_select %p446, %s29, 1
        %s448 = smul.addr %s447, 4
        %s449 = smul.addr %s448, 8
        %s450 = scalar_lea.vmem %s0, %s449
        %p451 = pneg %p50
        %p452 = pneg %p47
        %p453 = pneg %p71
        %p454 = pneg %p68
        %p455 = pneg %p92
        %p456 = pneg %p89
        %p457 = pneg %p113
        %p458 = pneg %p110
        %p459 = pneg %p134
        %p460 = pneg %p131
        %p461 = pneg %p155
        %p462 = pneg %p152
        %p463 = pneg %p176
        %p464 = pneg %p173
        %p465 = pneg %p197
        %p466 = pneg %p194
        %p467 = pneg %p218
        %p468 = pneg %p215
        %p469 = pneg %p239
        %p470 = pneg %p236
        %p471 = pneg %p260
        %p472 = pneg %p257
        %p473 = pneg %p281
        %p474 = pneg %p278
        %p475 = pneg %p302
        %p476 = pneg %p299
        %p477 = pneg %p323
        %p478 = pneg %p320
        %p479 = pneg %p344
        %p480 = pneg %p341
        %p481 = pneg %p370
        %p482 = pneg %p367
        %s483 = sand.u32 %s357, 1
        %s484 = scalar_lea.sflag [#allocation5], %s483
        %s485 = sand.u32 %s357, 1
        %s486 = scalar_lea.vmem [#allocation4], %s485
        %p487 = scmp.lt.s32.totalorder %s29, 1
        %s488 = scalar_select %p487, %s29, 1
        %s489 = smul.addr %s488, 4
        %s490 = smul.addr %s489, 8
        %s491 = scalar_lea.vmem %s0, %s490
        %v492 = vld [vmem:[%s491] sm:$0xff]
        %v493 = vld [vmem:[%s491 + $0x8] sm:$0xff]
        %v494 = vld [vmem:[%s491 + $0x10] sm:$0xff]
        %v495 = vld [vmem:[%s491 + $0x18] sm:$0x3f]
        %v496 = vld [vmem:[%s1] sm:$0xff]
        %v497 = vld [vmem:[%s1 + $0x8] sm:$0xff]
        %v498 = vld [vmem:[%s1 + $0x10] sm:$0xff]
        %v499 = vld [vmem:[%s1 + $0x18] sm:$0xff]
        %v500 = vld [vmem:[%s1 + $0x20] sm:$0xff]
        %v501 = vld [vmem:[%s1 + $0x28] sm:$0xff]
        %v502 = vld [vmem:[%s1 + $0x30] sm:$0xff]
        %v503 = vld [vmem:[%s1 + $0x38] sm:$0xff]
        %v504 = vld [vmem:[%s491 + $0x1] sm:$0xff]
        %v505 = vld [vmem:[%s491 + $0x9] sm:$0xff]
        %v506 = vld [vmem:[%s491 + $0x11] sm:$0xff]
        %v507 = vld [vmem:[%s491 + $0x19] sm:$0x3f]
        %s508 = scalar_lea.vmem %s1, 64
        %v509 = vld [vmem:[%s508] sm:$0xff]
        %v510 = vld [vmem:[%s508 + $0x8] sm:$0xff]
        %v511 = vld [vmem:[%s508 + $0x10] sm:$0xff]
        %v512 = vld [vmem:[%s508 + $0x18] sm:$0xff]
        %v513 = vld [vmem:[%s508 + $0x20] sm:$0xff]
        %v514 = vld [vmem:[%s508 + $0x28] sm:$0xff]
        %v515 = vld [vmem:[%s508 + $0x30] sm:$0xff]
        %v516 = vld [vmem:[%s508 + $0x38] sm:$0xff]
        %vm517 = vcmask 261120
        %v519 = vsel %vm517, %v504, 0
        %v522 = vsel %vm517, %v505, 0
        %v525 = vsel %vm517, %v506, 0
        %v528 = vsel %vm517, %v507, 0
        %530 = vmatpush.msra.mxu0 0.0
        %531 = vmatpush.msra.mxu0 0.0
        %532 = vmatpush.msra.mxu0 0.0
        %533 = vmatpush.msra.mxu0 0.0
        %534 = vmatpush.msra.mxu0 0.0
        %535 = vmatpush.msra.mxu0 0.0
        %536 = vmatpush.msra.mxu0 0.0
        %537 = vmatpush.msra.mxu0 0.0
        %538 = vmatpush.msra.mxu0 0.0
        %539 = vmatpush.msra.mxu0 0.0
        %540 = vmatpush.msra.mxu0 0.0
        %541 = vmatpush.msra.mxu0 0.0
        %542 = vmatpush.msra.mxu0 %v515
        %543 = vmatpush.msra.mxu0 %v513
        %544 = vmatpush.msra.mxu0 %v511
        %545 = vmatpush.msra.mxu0 %v509
        %546 = vmatmul.f32.gmra.mxu0 %v519
        %v547 = vpop.f32.mrf.mxu0
        %v548 = vadd.f32 0.0, %v547
        %549 = vmatmul.f32.gmra.mxu0 %v522
        %v550 = vpop.f32.mrf.mxu0
        %v551 = vadd.f32 0.0, %v550
        %552 = vmatmul.f32.gmra.mxu0 %v525
        %v553 = vpop.f32.mrf.mxu0
        %v554 = vadd.f32 0.0, %v553
        %555 = vmatmul.f32.gmra.mxu0 %v528
        %v556 = vpop.f32.mrf.mxu0
        %v557 = vadd.f32 0.0, %v556
        %558 = vdwg.mxu0
        %559 = vmatpush.msra.mxu0 0.0
        %560 = vmatpush.msra.mxu0 0.0
        %561 = vmatpush.msra.mxu0 0.0
        %562 = vmatpush.msra.mxu0 0.0
        %563 = vmatpush.msra.mxu0 0.0
        %564 = vmatpush.msra.mxu0 0.0
        %565 = vmatpush.msra.mxu0 0.0
        %566 = vmatpush.msra.mxu0 0.0
        %567 = vmatpush.msra.mxu0 0.0
        %568 = vmatpush.msra.mxu0 0.0
        %569 = vmatpush.msra.mxu0 0.0
        %570 = vmatpush.msra.mxu0 0.0
        %571 = vmatpush.msra.mxu0 %v516
        %572 = vmatpush.msra.mxu0 %v514
        %573 = vmatpush.msra.mxu0 %v512
        %574 = vmatpush.msra.mxu0 %v510
        %575 = vmatmul.f32.gmra.mxu0 %v519
        %v576 = vpop.f32.mrf.mxu0
        %v577 = vadd.f32 0.0, %v576
        %578 = vmatmul.f32.gmra.mxu0 %v522
        %v579 = vpop.f32.mrf.mxu0
        %v580 = vadd.f32 0.0, %v579
        %581 = vmatmul.f32.gmra.mxu0 %v525
        %v582 = vpop.f32.mrf.mxu0
        %v583 = vadd.f32 0.0, %v582
        %584 = vmatmul.f32.gmra.mxu0 %v528
        %v585 = vpop.f32.mrf.mxu0
        %v586 = vadd.f32 0.0, %v585
        %587 = vdwg.mxu0
        %v589 = vsel %vm517, %v492, 0
        %v592 = vsel %vm517, %v493, 0
        %v595 = vsel %vm517, %v494, 0
        %v598 = vsel %vm517, %v495, 0
        %600 = vmatpush.msra.mxu0 0.0
        %601 = vmatpush.msra.mxu0 0.0
        %602 = vmatpush.msra.mxu0 0.0
        %603 = vmatpush.msra.mxu0 0.0
        %604 = vmatpush.msra.mxu0 0.0
        %605 = vmatpush.msra.mxu0 0.0
        %606 = vmatpush.msra.mxu0 0.0
        %607 = vmatpush.msra.mxu0 0.0
        %608 = vmatpush.msra.mxu0 0.0
        %609 = vmatpush.msra.mxu0 0.0
        %610 = vmatpush.msra.mxu0 0.0
        %611 = vmatpush.msra.mxu0 0.0
        %612 = vmatpush.msra.mxu0 %v502
        %613 = vmatpush.msra.mxu0 %v500
        %614 = vmatpush.msra.mxu0 %v498
        %615 = vmatpush.msra.mxu0 %v496
        %616 = vmatmul.f32.gmra.mxu0 %v589
        %v617 = vpop.f32.mrf.mxu0
        %v618 = vadd.f32 %v548, %v617
        %619 = vmatmul.f32.gmra.mxu0 %v592
        %v620 = vpop.f32.mrf.mxu0
        %v621 = vadd.f32 %v551, %v620
        %622 = vmatmul.f32.gmra.mxu0 %v595
        %v623 = vpop.f32.mrf.mxu0
        %v624 = vadd.f32 %v554, %v623
        %625 = vmatmul.f32.gmra.mxu0 %v598
        %v626 = vpop.f32.mrf.mxu0
        %v627 = vadd.f32 %v557, %v626
        %628 = vdwg.mxu0
        %629 = vmatpush.msra.mxu0 0.0
        %630 = vmatpush.msra.mxu0 0.0
        %631 = vmatpush.msra.mxu0 0.0
        %632 = vmatpush.msra.mxu0 0.0
        %633 = vmatpush.msra.mxu0 0.0
        %634 = vmatpush.msra.mxu0 0.0
        %635 = vmatpush.msra.mxu0 0.0
        %636 = vmatpush.msra.mxu0 0.0
        %637 = vmatpush.msra.mxu0 0.0
        %638 = vmatpush.msra.mxu0 0.0
        %639 = vmatpush.msra.mxu0 0.0
        %640 = vmatpush.msra.mxu0 0.0
        %641 = vmatpush.msra.mxu0 %v503
        %642 = vmatpush.msra.mxu0 %v501
        %643 = vmatpush.msra.mxu0 %v499
        %644 = vmatpush.msra.mxu0 %v497
        %645 = vmatmul.f32.gmra.mxu0 %v589
        %v646 = vpop.f32.mrf.mxu0
        %v647 = vadd.f32 %v577, %v646
        %648 = vmatmul.f32.gmra.mxu0 %v592
        %v649 = vpop.f32.mrf.mxu0
        %v650 = vadd.f32 %v580, %v649
        %651 = vmatmul.f32.gmra.mxu0 %v595
        %v652 = vpop.f32.mrf.mxu0
        %v653 = vadd.f32 %v583, %v652
        %654 = vmatmul.f32.gmra.mxu0 %v598
        %v655 = vpop.f32.mrf.mxu0
        %v656 = vadd.f32 %v586, %v655
        %657 = vdwg.mxu0
        %v658 = vld [vmem:[%s491 + $0x2] sm:$0xff]
        %v659 = vld [vmem:[%s491 + $0xa] sm:$0xff]
        %v660 = vld [vmem:[%s491 + $0x12] sm:$0xff]
        %v661 = vld [vmem:[%s491 + $0x1a] sm:$0x3f]
        %s662 = scalar_lea.vmem %s1, 128
        %v663 = vld [vmem:[%s662] sm:$0xff]
        %v664 = vld [vmem:[%s662 + $0x8] sm:$0xff]
        %v665 = vld [vmem:[%s662 + $0x10] sm:$0xff]
        %v666 = vld [vmem:[%s662 + $0x18] sm:$0xff]
        %v667 = vld [vmem:[%s662 + $0x20] sm:$0xff]
        %v668 = vld [vmem:[%s662 + $0x28] sm:$0xff]
        %v669 = vld [vmem:[%s662 + $0x30] sm:$0xff]
        %v670 = vld [vmem:[%s662 + $0x38] sm:$0xff]
        %v672 = vsel %vm517, %v658, 0
        %v675 = vsel %vm517, %v659, 0
        %v678 = vsel %vm517, %v660, 0
        %v681 = vsel %vm517, %v661, 0
        %683 = vmatpush.msra.mxu0 0.0
        %684 = vmatpush.msra.mxu0 0.0
        %685 = vmatpush.msra.mxu0 0.0
        %686 = vmatpush.msra.mxu0 0.0
        %687 = vmatpush.msra.mxu0 0.0
        %688 = vmatpush.msra.mxu0 0.0
        %689 = vmatpush.msra.mxu0 0.0
        %690 = vmatpush.msra.mxu0 0.0
        %691 = vmatpush.msra.mxu0 0.0
        %692 = vmatpush.msra.mxu0 0.0
        %693 = vmatpush.msra.mxu0 0.0
        %694 = vmatpush.msra.mxu0 0.0
        %695 = vmatpush.msra.mxu0 %v669
        %696 = vmatpush.msra.mxu0 %v667
        %697 = vmatpush.msra.mxu0 %v665
        %698 = vmatpush.msra.mxu0 %v663
        %699 = vmatmul.f32.gmra.mxu0 %v672
        %v700 = vpop.f32.mrf.mxu0
        %v701 = vadd.f32 0.0, %v700
        %702 = vmatmul.f32.gmra.mxu0 %v675
        %v703 = vpop.f32.mrf.mxu0
        %v704 = vadd.f32 0.0, %v703
        %705 = vmatmul.f32.gmra.mxu0 %v678
        %v706 = vpop.f32.mrf.mxu0
        %v707 = vadd.f32 0.0, %v706
        %708 = vmatmul.f32.gmra.mxu0 %v681
        %v709 = vpop.f32.mrf.mxu0
        %v710 = vadd.f32 0.0, %v709
        %711 = vdwg.mxu0
        %712 = vmatpush.msra.mxu0 0.0
        %713 = vmatpush.msra.mxu0 0.0
        %714 = vmatpush.msra.mxu0 0.0
        %715 = vmatpush.msra.mxu0 0.0
        %716 = vmatpush.msra.mxu0 0.0
        %717 = vmatpush.msra.mxu0 0.0
        %718 = vmatpush.msra.mxu0 0.0
        %719 = vmatpush.msra.mxu0 0.0
        %720 = vmatpush.msra.mxu0 0.0
        %721 = vmatpush.msra.mxu0 0.0
        %722 = vmatpush.msra.mxu0 0.0
        %723 = vmatpush.msra.mxu0 0.0
        %724 = vmatpush.msra.mxu0 %v670
        %725 = vmatpush.msra.mxu0 %v668
        %726 = vmatpush.msra.mxu0 %v666
        %727 = vmatpush.msra.mxu0 %v664
        %728 = vmatmul.f32.gmra.mxu0 %v672
        %v729 = vpop.f32.mrf.mxu0
        %v730 = vadd.f32 0.0, %v729
        %731 = vmatmul.f32.gmra.mxu0 %v675
        %v732 = vpop.f32.mrf.mxu0
        %v733 = vadd.f32 0.0, %v732
        %734 = vmatmul.f32.gmra.mxu0 %v678
        %v735 = vpop.f32.mrf.mxu0
        %v736 = vadd.f32 0.0, %v735
        %737 = vmatmul.f32.gmra.mxu0 %v681
        %v738 = vpop.f32.mrf.mxu0
        %v739 = vadd.f32 0.0, %v738
        %740 = vdwg.mxu0
        %v741 = vadd.f32 %v618, %v701
        %v742 = vadd.f32 %v647, %v730
        %v743 = vadd.f32 %v621, %v704
        %v744 = vadd.f32 %v650, %v733
        %v745 = vadd.f32 %v624, %v707
        %v746 = vadd.f32 %v653, %v736
        %v747 = vadd.f32 %v627, %v710
        %v748 = vadd.f32 %v656, %v739
        %v749 = vld [vmem:[%s2] sm:$0x3]
        %v751 = vperm.slane %v749, 0
        %v752 = vperm.slane %v749, 1
        %v755 = vadd.f32 %v741, %v751
        %v756 = vadd.f32 %v742, %v752
        %v757 = vadd.f32 %v743, %v751
        %v758 = vadd.f32 %v744, %v752
        %v759 = vadd.f32 %v745, %v751
        %v760 = vadd.f32 %v746, %v752
        %v761 = vadd.f32 %v747, %v751
        %v762 = vadd.f32 %v748, %v752
        %v763 = vmax.f32 %v755, 0.0
        %v764 = vmax.f32 %v756, 0.0
        %v765 = vmax.f32 %v757, 0.0
        %v766 = vmax.f32 %v758, 0.0
        %v767 = vmax.f32 %v759, 0.0
        %v768 = vmax.f32 %v760, 0.0
        %v769 = vmax.f32 %v761, 0.0
        %v770 = vmax.f32 %v762, 0.0
        %v771 = vld [vmem:[%s3] sm:$0xff]
        %v772 = vld [vmem:[%s3 + $0x8] sm:$0xff]
        %v773 = vld [vmem:[%s3 + $0x10] sm:$0xff]
        %v774 = vld [vmem:[%s3 + $0x18] sm:$0xff]
        %v775 = vld [vmem:[%s3 + $0x20] sm:$0xff]
        %v776 = vld [vmem:[%s3 + $0x28] sm:$0xff]
        %v777 = vld [vmem:[%s3 + $0x30] sm:$0xff]
        %v778 = vld [vmem:[%s3 + $0x38] sm:$0xff]
        %v779 = vld [vmem:[%s3 + $0x40] sm:$0xff]
        %v780 = vld [vmem:[%s3 + $0x48] sm:$0xff]
        %v781 = vld [vmem:[%s3 + $0x50] sm:$0xff]
        %v782 = vld [vmem:[%s3 + $0x58] sm:$0xff]
        %v783 = vld [vmem:[%s3 + $0x60] sm:$0xff]
        %v784 = vld [vmem:[%s3 + $0x68] sm:$0xff]
        %v785 = vld [vmem:[%s3 + $0x70] sm:$0xff]
        %v786 = vld [vmem:[%s3 + $0x78] sm:$0xff]
        %v787 = vld [vmem:[%s3 + $0x80] sm:$0xff]
        %v788 = vld [vmem:[%s3 + $0x88] sm:$0xff]
        %v789 = vld [vmem:[%s3 + $0x90] sm:$0xff]
        %v790 = vld [vmem:[%s3 + $0x98] sm:$0xff]
        %v791 = vld [vmem:[%s3 + $0xa0] sm:$0xff]
        %v792 = vld [vmem:[%s3 + $0xa8] sm:$0xff]
        %v793 = vld [vmem:[%s3 + $0xb0] sm:$0xf]
        %vm794 = vcmask 424960
        %v796 = vsel %vm794, %v764, 0
        %v799 = vsel %vm794, %v766, 0
        %v802 = vsel %vm794, %v768, 0
        %v805 = vsel %vm794, %v770, 0
        %vm807 = vcmask 1043456
        %v809 = vsel %vm807, %v793, 0
        %811 = vmatpush.msra.mxu0 %v786
        %812 = vmatpush.msra.mxu0 %v785
        %813 = vmatpush.msra.mxu0 %v784
        %814 = vmatpush.msra.mxu0 %v783
        %815 = vmatpush.msra.mxu0 %v782
        %816 = vmatpush.msra.mxu0 %v781
        %817 = vmatpush.msra.mxu0 %v780
        %818 = vmatpush.msra.mxu0 %v779
        %819 = vmatpush.msra.mxu0 %v778
        %820 = vmatpush.msra.mxu0 %v777
        %821 = vmatpush.msra.mxu0 %v776
        %822 = vmatpush.msra.mxu0 %v775
        %823 = vmatpush.msra.mxu0 %v774
        %824 = vmatpush.msra.mxu0 %v773
        %825 = vmatpush.msra.mxu0 %v772
        %826 = vmatpush.msra.mxu0 %v771
        %827 = vmatmul.f32.gmra.mxu0 %v763
        %v828 = vpop.f32.mrf.mxu0
        %v829 = vadd.f32 0.0, %v828
        %830 = vmatmul.f32.gmra.mxu0 %v765
        %v831 = vpop.f32.mrf.mxu0
        %v832 = vadd.f32 0.0, %v831
        %833 = vmatmul.f32.gmra.mxu0 %v767
        %v834 = vpop.f32.mrf.mxu0
        %v835 = vadd.f32 0.0, %v834
        %836 = vmatmul.f32.gmra.mxu0 %v769
        %v837 = vpop.f32.mrf.mxu0
        %v838 = vadd.f32 0.0, %v837
        %839 = vdwg.mxu0
        %840 = vmatpush.msra.mxu0 0.0
        %841 = vmatpush.msra.mxu0 0.0
        %842 = vmatpush.msra.mxu0 0.0
        %843 = vmatpush.msra.mxu0 0.0
        %844 = vmatpush.msra.mxu0 0.0
        %845 = vmatpush.msra.mxu0 0.0
        %846 = vmatpush.msra.mxu0 0.0
        %847 = vmatpush.msra.mxu0 0.0
        %848 = vmatpush.msra.mxu0 0.0
        %849 = vmatpush.msra.mxu0 %v809
        %850 = vmatpush.msra.mxu0 %v792
        %851 = vmatpush.msra.mxu0 %v791
        %852 = vmatpush.msra.mxu0 %v790
        %853 = vmatpush.msra.mxu0 %v789
        %854 = vmatpush.msra.mxu0 %v788
        %855 = vmatpush.msra.mxu0 %v787
        %856 = vmatmul.f32.gmra.mxu0 %v796
        %v857 = vpop.f32.mrf.mxu0
        %v858 = vadd.f32 %v829, %v857
        %859 = vmatmul.f32.gmra.mxu0 %v799
        %v860 = vpop.f32.mrf.mxu0
        %v861 = vadd.f32 %v832, %v860
        %862 = vmatmul.f32.gmra.mxu0 %v802
        %v863 = vpop.f32.mrf.mxu0
        %v864 = vadd.f32 %v835, %v863
        %865 = vmatmul.f32.gmra.mxu0 %v805
        %v866 = vpop.f32.mrf.mxu0
        %v867 = vadd.f32 %v838, %v866
        %868 = vdwg.mxu0
        %s869 = scalar_lea.vmem %s3, 184
        %v870 = vld [vmem:[%s869] sm:$0xff]
        %v871 = vld [vmem:[%s869 + $0x8] sm:$0xff]
        %v872 = vld [vmem:[%s869 + $0x10] sm:$0xff]
        %v873 = vld [vmem:[%s869 + $0x18] sm:$0xff]
        %v874 = vld [vmem:[%s869 + $0x20] sm:$0xff]
        %v875 = vld [vmem:[%s869 + $0x28] sm:$0xff]
        %v876 = vld [vmem:[%s869 + $0x30] sm:$0xff]
        %v877 = vld [vmem:[%s869 + $0x38] sm:$0xff]
        %v878 = vld [vmem:[%s869 + $0x40] sm:$0xff]
        %v879 = vld [vmem:[%s869 + $0x48] sm:$0xff]
        %v880 = vld [vmem:[%s869 + $0x50] sm:$0xff]
        %v881 = vld [vmem:[%s869 + $0x58] sm:$0xff]
        %v882 = vld [vmem:[%s869 + $0x60] sm:$0xff]
        %v883 = vld [vmem:[%s869 + $0x68] sm:$0xff]
        %v884 = vld [vmem:[%s869 + $0x70] sm:$0xff]
        %v885 = vld [vmem:[%s869 + $0x78] sm:$0xff]
        %v886 = vld [vmem:[%s869 + $0x80] sm:$0xff]
        %v887 = vld [vmem:[%s869 + $0x88] sm:$0xff]
        %v888 = vld [vmem:[%s869 + $0x90] sm:$0xff]
        %v889 = vld [vmem:[%s869 + $0x98] sm:$0xff]
        %v890 = vld [vmem:[%s869 + $0xa0] sm:$0xff]
        %v891 = vld [vmem:[%s869 + $0xa8] sm:$0xff]
        %v892 = vld [vmem:[%s869 + $0xb0] sm:$0xf]
        %v894 = vsel %vm807, %v892, 0
        %896 = vmatpush.msra.mxu0 %v885
        %897 = vmatpush.msra.mxu0 %v884
        %898 = vmatpush.msra.mxu0 %v883
        %899 = vmatpush.msra.mxu0 %v882
        %900 = vmatpush.msra.mxu0 %v881
        %901 = vmatpush.msra.mxu0 %v880
        %902 = vmatpush.msra.mxu0 %v879
        %903 = vmatpush.msra.mxu0 %v878
        %904 = vmatpush.msra.mxu0 %v877
        %905 = vmatpush.msra.mxu0 %v876
        %906 = vmatpush.msra.mxu0 %v875
        %907 = vmatpush.msra.mxu0 %v874
        %908 = vmatpush.msra.mxu0 %v873
        %909 = vmatpush.msra.mxu0 %v872
        %910 = vmatpush.msra.mxu0 %v871
        %911 = vmatpush.msra.mxu0 %v870
        %912 = vmatmul.f32.gmra.mxu0 %v763
        %v913 = vpop.f32.mrf.mxu0
        %v914 = vadd.f32 0.0, %v913
        %915 = vmatmul.f32.gmra.mxu0 %v765
        %v916 = vpop.f32.mrf.mxu0
        %v917 = vadd.f32 0.0, %v916
        %918 = vmatmul.f32.gmra.mxu0 %v767
        %v919 = vpop.f32.mrf.mxu0
        %v920 = vadd.f32 0.0, %v919
        %921 = vmatmul.f32.gmra.mxu0 %v769
        %v922 = vpop.f32.mrf.mxu0
        %v923 = vadd.f32 0.0, %v922
        %924 = vdwg.mxu0
        %925 = vmatpush.msra.mxu0 0.0
        %926 = vmatpush.msra.mxu0 0.0
        %927 = vmatpush.msra.mxu0 0.0
        %928 = vmatpush.msra.mxu0 0.0
        %929 = vmatpush.msra.mxu0 0.0
        %930 = vmatpush.msra.mxu0 0.0
        %931 = vmatpush.msra.mxu0 0.0
        %932 = vmatpush.msra.mxu0 0.0
        %933 = vmatpush.msra.mxu0 0.0
        %934 = vmatpush.msra.mxu0 %v894
        %935 = vmatpush.msra.mxu0 %v891
        %936 = vmatpush.msra.mxu0 %v890
        %937 = vmatpush.msra.mxu0 %v889
        %938 = vmatpush.msra.mxu0 %v888
        %939 = vmatpush.msra.mxu0 %v887
        %940 = vmatpush.msra.mxu0 %v886
        %941 = vmatmul.f32.gmra.mxu0 %v796
        %v942 = vpop.f32.mrf.mxu0
        %v943 = vadd.f32 %v914, %v942
        %944 = vmatmul.f32.gmra.mxu0 %v799
        %v945 = vpop.f32.mrf.mxu0
        %v946 = vadd.f32 %v917, %v945
        %947 = vmatmul.f32.gmra.mxu0 %v802
        %v948 = vpop.f32.mrf.mxu0
        %v949 = vadd.f32 %v920, %v948
        %950 = vmatmul.f32.gmra.mxu0 %v805
        %v951 = vpop.f32.mrf.mxu0
        %v952 = vadd.f32 %v923, %v951
        %953 = vdwg.mxu0
        %v954 = vmax.f32 %v858, %v943
        %v955 = vmax.f32 %v861, %v946
        %v956 = vmax.f32 %v864, %v949
        %v957 = vmax.f32 %v867, %v952
        %v958 = vld [vmem:[%s4] sm:$0xff]
        %v959 = vld [vmem:[%s4 + $0x8] sm:$0x7f]
        %vm960 = vcmask 244736
        %v962 = vsel %vm960, %v958, 0
        %v965 = vsel %vm960, %v959, 0
        %vm967 = vcmask 1045504
        %v969 = vsel %vm967, %v957, 0
        %971 = vmatpush.msra.mxu0 0.0
        %972 = vmatpush.msra.mxu0 0.0
        %973 = vmatpush.msra.mxu0 0.0
        %974 = vmatpush.msra.mxu0 0.0
        %975 = vmatpush.msra.mxu0 0.0
        %976 = vmatpush.msra.mxu0 0.0
        %977 = vmatpush.msra.mxu0 0.0
        %978 = vmatpush.msra.mxu0 0.0
        %979 = vmatpush.msra.mxu0 0.0
        %980 = vmatpush.msra.mxu0 0.0
        %981 = vmatpush.msra.mxu0 0.0
        %982 = vmatpush.msra.mxu0 0.0
        %983 = vmatpush.msra.mxu0 %v969
        %984 = vmatpush.msra.mxu0 %v956
        %985 = vmatpush.msra.mxu0 %v955
        %986 = vmatpush.msra.mxu0 %v954
        %987 = vmatmul.f32.gmra.mxu0 %v962
        %v988 = vpop.f32.mrf.mxu0
        %v989 = vadd.f32 0.0, %v988
        %990 = vmatmul.f32.gmra.mxu0 %v965
        %v991 = vpop.f32.mrf.mxu0
        %v992 = vadd.f32 0.0, %v991
        %993 = vdwg.mxu0
        %s994 = scalar_lea.vmem %s4, 16
        %v995 = vld [vmem:[%s994] sm:$0xff]
        %v996 = vld [vmem:[%s994 + $0x8] sm:$0x7f]
        %v998 = vsel %vm960, %v995, 0
        %v1001 = vsel %vm960, %v996, 0
        %1003 = vmatpush.msra.mxu0 0.0
        %1004 = vmatpush.msra.mxu0 0.0
        %1005 = vmatpush.msra.mxu0 0.0
        %1006 = vmatpush.msra.mxu0 0.0
        %1007 = vmatpush.msra.mxu0 0.0
        %1008 = vmatpush.msra.mxu0 0.0
        %1009 = vmatpush.msra.mxu0 0.0
        %1010 = vmatpush.msra.mxu0 0.0
        %1011 = vmatpush.msra.mxu0 0.0
        %1012 = vmatpush.msra.mxu0 0.0
        %1013 = vmatpush.msra.mxu0 0.0
        %1014 = vmatpush.msra.mxu0 0.0
        %1015 = vmatpush.msra.mxu0 %v969
        %1016 = vmatpush.msra.mxu0 %v956
        %1017 = vmatpush.msra.mxu0 %v955
        %1018 = vmatpush.msra.mxu0 %v954
        %1019 = vmatmul.f32.gmra.mxu0 %v998
        %v1020 = vpop.f32.mrf.mxu0
        %v1021 = vadd.f32 0.0, %v1020
        %1022 = vmatmul.f32.gmra.mxu0 %v1001
        %v1023 = vpop.f32.mrf.mxu0
        %v1024 = vadd.f32 0.0, %v1023
        %1025 = vdwg.mxu0
        %v1026 = vmax.f32 %v989, %v1021
        %v1027 = vmax.f32 %v992, %v1024
        %vm1028 = vcmask 736256
        %1029 = vst.msk [vmem:[#allocation2] sm:$0xff] %vm1028, %v1026
        %vm1030 = vcmask 735232
        %1031 = vst.msk [vmem:[#allocation2 + $0x8] sm:$0x7f] %vm1030, %v1027
        %v1032 = vld [vmem:[#allocation2] sm:$0xff]
        %v1033 = vld [vmem:[#allocation2 + $0x8] sm:$0x1f]
        %v1034 = vld [vmem:[%s5] sm:$0xff]
        %v1035 = vld [vmem:[%s5 + $0x8] sm:$0xff]
        %v1036 = vld [vmem:[%s5 + $0x10] sm:$0xff]
        %v1037 = vld [vmem:[%s5 + $0x18] sm:$0xff]
        %v1038 = vld [vmem:[%s5 + $0x20] sm:$0xff]
        %v1039 = vld [vmem:[%s5 + $0x28] sm:$0xff]
        %v1040 = vld [vmem:[%s5 + $0x30] sm:$0xff]
        %v1041 = vld [vmem:[%s5 + $0x38] sm:$0xff]
        %v1042 = vld [vmem:[%s5 + $0x40] sm:$0xff]
        %v1043 = vld [vmem:[%s5 + $0x48] sm:$0xff]
        %v1044 = vld [vmem:[%s5 + $0x50] sm:$0xff]
        %v1045 = vld [vmem:[%s5 + $0x58] sm:$0xff]
        %v1046 = vld [vmem:[%s5 + $0x60] sm:$0xff]
        %v1047 = vld [vmem:[%s5 + $0x68] sm:$0xff]
        %v1048 = vld [vmem:[%s5 + $0x70] sm:$0xff]
        %v1049 = vld [vmem:[%s5 + $0x78] sm:$0xff]
        %v1050 = vld [vmem:[%s5 + $0x80] sm:$0xff]
        %v1051 = vld [vmem:[%s5 + $0x88] sm:$0xff]
        %v1052 = vld [vmem:[%s5 + $0x90] sm:$0xff]
        %v1053 = vld [vmem:[%s5 + $0x98] sm:$0xff]
        %v1054 = vld [vmem:[%s5 + $0xa0] sm:$0xff]
        %v1055 = vld [vmem:[%s5 + $0xa8] sm:$0xff]
        %v1056 = vld [vmem:[%s5 + $0xb0] sm:$0x3]
        %v1057 = vld [vmem:[%s5 + $0xb8] sm:$0x3]
        %v1058 = vld [vmem:[#allocation2 + $0x1] sm:$0xff]
        %v1059 = vld [vmem:[#allocation2 + $0x9] sm:$0x1f]
        %s1060 = scalar_lea.vmem %s5, 192
        %v1061 = vld [vmem:[%s1060] sm:$0xff]
        %v1062 = vld [vmem:[%s1060 + $0x8] sm:$0xff]
        %v1063 = vld [vmem:[%s1060 + $0x10] sm:$0xff]
        %v1064 = vld [vmem:[%s1060 + $0x18] sm:$0xff]
        %v1065 = vld [vmem:[%s1060 + $0x20] sm:$0xff]
        %v1066 = vld [vmem:[%s1060 + $0x28] sm:$0xff]
        %v1067 = vld [vmem:[%s1060 + $0x30] sm:$0xff]
        %v1068 = vld [vmem:[%s1060 + $0x38] sm:$0xff]
        %v1069 = vld [vmem:[%s1060 + $0x40] sm:$0xff]
        %v1070 = vld [vmem:[%s1060 + $0x48] sm:$0xff]
        %v1071 = vld [vmem:[%s1060 + $0x50] sm:$0xff]
        %v1072 = vld [vmem:[%s1060 + $0x58] sm:$0xff]
        %v1073 = vld [vmem:[%s1060 + $0x60] sm:$0xff]
        %v1074 = vld [vmem:[%s1060 + $0x68] sm:$0xff]
        %v1075 = vld [vmem:[%s1060 + $0x70] sm:$0xff]
        %v1076 = vld [vmem:[%s1060 + $0x78] sm:$0xff]
        %v1077 = vld [vmem:[%s1060 + $0x80] sm:$0xff]
        %v1078 = vld [vmem:[%s1060 + $0x88] sm:$0xff]
        %v1079 = vld [vmem:[%s1060 + $0x90] sm:$0xff]
        %v1080 = vld [vmem:[%s1060 + $0x98] sm:$0xff]
        %v1081 = vld [vmem:[%s1060 + $0xa0] sm:$0xff]
        %v1082 = vld [vmem:[%s1060 + $0xa8] sm:$0xff]
        %v1083 = vld [vmem:[%s1060 + $0xb0] sm:$0x3]
        %v1084 = vld [vmem:[%s1060 + $0xb8] sm:$0x3]
        %v1086 = vsel %vm1028, %v1058, 0
        %v1089 = vsel %vm1028, %v1059, 0
        %vm1091 = vcmask 1041408
        %v1093 = vsel %vm1091, %v1083, 0
        %v1096 = vsel %vm1091, %v1084, 0
        %1098 = vmatpush.msra.mxu0 0.0
        %1099 = vmatpush.msra.mxu0 0.0
        %1100 = vmatpush.msra.mxu0 0.0
        %1101 = vmatpush.msra.mxu0 0.0
        %1102 = vmatpush.msra.mxu0 %v1093
        %1103 = vmatpush.msra.mxu0 %v1081
        %1104 = vmatpush.msra.mxu0 %v1079
        %1105 = vmatpush.msra.mxu0 %v1077
        %1106 = vmatpush.msra.mxu0 %v1075
        %1107 = vmatpush.msra.mxu0 %v1073
        %1108 = vmatpush.msra.mxu0 %v1071
        %1109 = vmatpush.msra.mxu0 %v1069
        %1110 = vmatpush.msra.mxu0 %v1067
        %1111 = vmatpush.msra.mxu0 %v1065
        %1112 = vmatpush.msra.mxu0 %v1063
        %1113 = vmatpush.msra.mxu0 %v1061
        %1114 = vmatmul.f32.gmra.mxu0 %v1086
        %v1115 = vpop.f32.mrf.mxu0
        %v1116 = vadd.f32 0.0, %v1115
        %1117 = vmatmul.f32.gmra.mxu0 %v1089
        %v1118 = vpop.f32.mrf.mxu0
        %v1119 = vadd.f32 0.0, %v1118
        %1120 = vdwg.mxu0
        %1121 = vmatpush.msra.mxu0 0.0
        %1122 = vmatpush.msra.mxu0 0.0
        %1123 = vmatpush.msra.mxu0 0.0
        %1124 = vmatpush.msra.mxu0 0.0
        %1125 = vmatpush.msra.mxu0 %v1096
        %1126 = vmatpush.msra.mxu0 %v1082
        %1127 = vmatpush.msra.mxu0 %v1080
        %1128 = vmatpush.msra.mxu0 %v1078
        %1129 = vmatpush.msra.mxu0 %v1076
        %1130 = vmatpush.msra.mxu0 %v1074
        %1131 = vmatpush.msra.mxu0 %v1072
        %1132 = vmatpush.msra.mxu0 %v1070
        %1133 = vmatpush.msra.mxu0 %v1068
        %1134 = vmatpush.msra.mxu0 %v1066
        %1135 = vmatpush.msra.mxu0 %v1064
        %1136 = vmatpush.msra.mxu0 %v1062
        %1137 = vmatmul.f32.gmra.mxu0 %v1086
        %v1138 = vpop.f32.mrf.mxu0
        %v1139 = vadd.f32 0.0, %v1138
        %1140 = vmatmul.f32.gmra.mxu0 %v1089
        %v1141 = vpop.f32.mrf.mxu0
        %v1142 = vadd.f32 0.0, %v1141
        %1143 = vdwg.mxu0
        %v1145 = vsel %vm1028, %v1032, 0
        %v1148 = vsel %vm1028, %v1033, 0
        %v1151 = vsel %vm1091, %v1056, 0
        %v1154 = vsel %vm1091, %v1057, 0
        %1156 = vmatpush.msra.mxu0 0.0
        %1157 = vmatpush.msra.mxu0 0.0
        %1158 = vmatpush.msra.mxu0 0.0
        %1159 = vmatpush.msra.mxu0 0.0
        %1160 = vmatpush.msra.mxu0 %v1151
        %1161 = vmatpush.msra.mxu0 %v1054
        %1162 = vmatpush.msra.mxu0 %v1052
        %1163 = vmatpush.msra.mxu0 %v1050
        %1164 = vmatpush.msra.mxu0 %v1048
        %1165 = vmatpush.msra.mxu0 %v1046
        %1166 = vmatpush.msra.mxu0 %v1044
        %1167 = vmatpush.msra.mxu0 %v1042
        %1168 = vmatpush.msra.mxu0 %v1040
        %1169 = vmatpush.msra.mxu0 %v1038
        %1170 = vmatpush.msra.mxu0 %v1036
        %1171 = vmatpush.msra.mxu0 %v1034
        %1172 = vmatmul.f32.gmra.mxu0 %v1145
        %v1173 = vpop.f32.mrf.mxu0
        %v1174 = vadd.f32 %v1116, %v1173
        %1175 = vmatmul.f32.gmra.mxu0 %v1148
        %v1176 = vpop.f32.mrf.mxu0
        %v1177 = vadd.f32 %v1119, %v1176
        %1178 = vdwg.mxu0
        %1179 = vmatpush.msra.mxu0 0.0
        %1180 = vmatpush.msra.mxu0 0.0
        %1181 = vmatpush.msra.mxu0 0.0
        %1182 = vmatpush.msra.mxu0 0.0
        %1183 = vmatpush.msra.mxu0 %v1154
        %1184 = vmatpush.msra.mxu0 %v1055
        %1185 = vmatpush.msra.mxu0 %v1053
        %1186 = vmatpush.msra.mxu0 %v1051
        %1187 = vmatpush.msra.mxu0 %v1049
        %1188 = vmatpush.msra.mxu0 %v1047
        %1189 = vmatpush.msra.mxu0 %v1045
        %1190 = vmatpush.msra.mxu0 %v1043
        %1191 = vmatpush.msra.mxu0 %v1041
        %1192 = vmatpush.msra.mxu0 %v1039
        %1193 = vmatpush.msra.mxu0 %v1037
        %1194 = vmatpush.msra.mxu0 %v1035
        %1195 = vmatmul.f32.gmra.mxu0 %v1145
        %v1196 = vpop.f32.mrf.mxu0
        %v1197 = vadd.f32 %v1139, %v1196
        %1198 = vmatmul.f32.gmra.mxu0 %v1148
        %v1199 = vpop.f32.mrf.mxu0
        %v1200 = vadd.f32 %v1142, %v1199
        %1201 = vdwg.mxu0
        %v1202 = vld [vmem:[#allocation2 + $0x2] sm:$0xff]
        %v1203 = vld [vmem:[#allocation2 + $0xa] sm:$0x1f]
        %s1204 = scalar_lea.vmem %s5, 384
        %v1205 = vld [vmem:[%s1204] sm:$0xff]
        %v1206 = vld [vmem:[%s1204 + $0x8] sm:$0xff]
        %v1207 = vld [vmem:[%s1204 + $0x10] sm:$0xff]
        %v1208 = vld [vmem:[%s1204 + $0x18] sm:$0xff]
        %v1209 = vld [vmem:[%s1204 + $0x20] sm:$0xff]
        %v1210 = vld [vmem:[%s1204 + $0x28] sm:$0xff]
        %v1211 = vld [vmem:[%s1204 + $0x30] sm:$0xff]
        %v1212 = vld [vmem:[%s1204 + $0x38] sm:$0xff]
        %v1213 = vld [vmem:[%s1204 + $0x40] sm:$0xff]
        %v1214 = vld [vmem:[%s1204 + $0x48] sm:$0xff]
        %v1215 = vld [vmem:[%s1204 + $0x50] sm:$0xff]
        %v1216 = vld [vmem:[%s1204 + $0x58] sm:$0xff]
        %v1217 = vld [vmem:[%s1204 + $0x60] sm:$0xff]
        %v1218 = vld [vmem:[%s1204 + $0x68] sm:$0xff]
        %v1219 = vld [vmem:[%s1204 + $0x70] sm:$0xff]
        %v1220 = vld [vmem:[%s1204 + $0x78] sm:$0xff]
        %v1221 = vld [vmem:[%s1204 + $0x80] sm:$0xff]
        %v1222 = vld [vmem:[%s1204 + $0x88] sm:$0xff]
        %v1223 = vld [vmem:[%s1204 + $0x90] sm:$0xff]
        %v1224 = vld [vmem:[%s1204 + $0x98] sm:$0xff]
        %v1225 = vld [vmem:[%s1204 + $0xa0] sm:$0xff]
        %v1226 = vld [vmem:[%s1204 + $0xa8] sm:$0xff]
        %v1227 = vld [vmem:[%s1204 + $0xb0] sm:$0x3]
        %v1228 = vld [vmem:[%s1204 + $0xb8] sm:$0x3]
        %v1230 = vsel %vm1028, %v1202, 0
        %v1233 = vsel %vm1028, %v1203, 0
        %v1236 = vsel %vm1091, %v1227, 0
        %v1239 = vsel %vm1091, %v1228, 0
        %1241 = vmatpush.msra.mxu0 0.0
        %1242 = vmatpush.msra.mxu0 0.0
        %1243 = vmatpush.msra.mxu0 0.0
        %1244 = vmatpush.msra.mxu0 0.0
        %1245 = vmatpush.msra.mxu0 %v1236
        %1246 = vmatpush.msra.mxu0 %v1225
        %1247 = vmatpush.msra.mxu0 %v1223
        %1248 = vmatpush.msra.mxu0 %v1221
        %1249 = vmatpush.msra.mxu0 %v1219
        %1250 = vmatpush.msra.mxu0 %v1217
        %1251 = vmatpush.msra.mxu0 %v1215
        %1252 = vmatpush.msra.mxu0 %v1213
        %1253 = vmatpush.msra.mxu0 %v1211
        %1254 = vmatpush.msra.mxu0 %v1209
        %1255 = vmatpush.msra.mxu0 %v1207
        %1256 = vmatpush.msra.mxu0 %v1205
        %1257 = vmatmul.f32.gmra.mxu0 %v1230
        %v1258 = vpop.f32.mrf.mxu0
        %v1259 = vadd.f32 0.0, %v1258
        %1260 = vmatmul.f32.gmra.mxu0 %v1233
        %v1261 = vpop.f32.mrf.mxu0
        %v1262 = vadd.f32 0.0, %v1261
        %1263 = vdwg.mxu0
        %1264 = vmatpush.msra.mxu0 0.0
        %1265 = vmatpush.msra.mxu0 0.0
        %1266 = vmatpush.msra.mxu0 0.0
        %1267 = vmatpush.msra.mxu0 0.0
        %1268 = vmatpush.msra.mxu0 %v1239
        %1269 = vmatpush.msra.mxu0 %v1226
        %1270 = vmatpush.msra.mxu0 %v1224
        %1271 = vmatpush.msra.mxu0 %v1222
        %1272 = vmatpush.msra.mxu0 %v1220
        %1273 = vmatpush.msra.mxu0 %v1218
        %1274 = vmatpush.msra.mxu0 %v1216
        %1275 = vmatpush.msra.mxu0 %v1214
        %1276 = vmatpush.msra.mxu0 %v1212
        %1277 = vmatpush.msra.mxu0 %v1210
        %1278 = vmatpush.msra.mxu0 %v1208
        %1279 = vmatpush.msra.mxu0 %v1206
        %1280 = vmatmul.f32.gmra.mxu0 %v1230
        %v1281 = vpop.f32.mrf.mxu0
        %v1282 = vadd.f32 0.0, %v1281
        %1283 = vmatmul.f32.gmra.mxu0 %v1233
        %v1284 = vpop.f32.mrf.mxu0
        %v1285 = vadd.f32 0.0, %v1284
        %1286 = vdwg.mxu0
        %v1287 = vadd.f32 %v1174, %v1259
        %v1288 = vadd.f32 %v1197, %v1282
        %v1289 = vadd.f32 %v1177, %v1262
        %v1290 = vadd.f32 %v1200, %v1285
        %v1291 = vld [vmem:[%s6] sm:$0x3]
        %v1293 = vperm.slane %v1291, 0
        %v1294 = vperm.slane %v1291, 1
        %v1297 = vadd.f32 %v1287, %v1293
        %v1298 = vadd.f32 %v1288, %v1294
        %v1299 = vadd.f32 %v1289, %v1293
        %v1300 = vadd.f32 %v1290, %v1294
        %v1301 = vmax.f32 %v1297, 0.0
        %v1302 = vmax.f32 %v1298, 0.0
        %v1303 = vmax.f32 %v1299, 0.0
        %v1304 = vmax.f32 %v1300, 0.0
        %v1305 = vld [vmem:[%s7] sm:$0xff]
        %v1306 = vld [vmem:[%s7 + $0x8] sm:$0xff]
        %v1307 = vld [vmem:[%s7 + $0x10] sm:$0xff]
        %v1308 = vld [vmem:[%s7 + $0x18] sm:$0xff]
        %v1309 = vld [vmem:[%s7 + $0x20] sm:$0xff]
        %v1310 = vld [vmem:[%s7 + $0x28] sm:$0xff]
        %v1311 = vld [vmem:[%s7 + $0x30] sm:$0xff]
        %v1312 = vld [vmem:[%s7 + $0x38] sm:$0xff]
        %v1313 = vld [vmem:[%s7 + $0x40] sm:$0xff]
        %v1314 = vld [vmem:[%s7 + $0x48] sm:$0xff]
        %v1315 = vld [vmem:[%s7 + $0x50] sm:$0xff]
        %v1316 = vld [vmem:[%s7 + $0x58] sm:$0xff]
        %v1317 = vld [vmem:[%s7 + $0x60] sm:$0xff]
        %v1318 = vld [vmem:[%s7 + $0x68] sm:$0xff]
        %v1319 = vld [vmem:[%s7 + $0x70] sm:$0xff]
        %v1320 = vld [vmem:[%s7 + $0x78] sm:$0xff]
        %v1321 = vld [vmem:[%s7 + $0x80] sm:$0xff]
        %v1322 = vld [vmem:[%s7 + $0x88] sm:$0xff]
        %v1323 = vld [vmem:[%s7 + $0x90] sm:$0xff]
        %v1324 = vld [vmem:[%s7 + $0x98] sm:$0xff]
        %v1325 = vld [vmem:[%s7 + $0xa0] sm:$0xff]
        %v1326 = vld [vmem:[%s7 + $0xa8] sm:$0xff]
        %v1327 = vld [vmem:[%s7 + $0xb0] sm:$0xff]
        %v1328 = vld [vmem:[%s7 + $0xb8] sm:$0xff]
        %v1329 = vld [vmem:[%s7 + $0xc0] sm:$0xff]
        %v1330 = vld [vmem:[%s7 + $0xc8] sm:$0xff]
        %vm1331 = vcmask 654336
        %v1333 = vsel %vm1331, %v1302, 0
        %v1336 = vsel %vm1331, %v1304, 0
        %1338 = vmatpush.msra.mxu0 %v1320
        %1339 = vmatpush.msra.mxu0 %v1319
        %1340 = vmatpush.msra.mxu0 %v1318
        %1341 = vmatpush.msra.mxu0 %v1317
        %1342 = vmatpush.msra.mxu0 %v1316
        %1343 = vmatpush.msra.mxu0 %v1315
        %1344 = vmatpush.msra.mxu0 %v1314
        %1345 = vmatpush.msra.mxu0 %v1313
        %1346 = vmatpush.msra.mxu0 %v1312
        %1347 = vmatpush.msra.mxu0 %v1311
        %1348 = vmatpush.msra.mxu0 %v1310
        %1349 = vmatpush.msra.mxu0 %v1309
        %1350 = vmatpush.msra.mxu0 %v1308
        %1351 = vmatpush.msra.mxu0 %v1307
        %1352 = vmatpush.msra.mxu0 %v1306
        %1353 = vmatpush.msra.mxu0 %v1305
        %1354 = vmatmul.f32.gmra.mxu0 %v1301
        %v1355 = vpop.f32.mrf.mxu0
        %v1356 = vadd.f32 0.0, %v1355
        %1357 = vmatmul.f32.gmra.mxu0 %v1303
        %v1358 = vpop.f32.mrf.mxu0
        %v1359 = vadd.f32 0.0, %v1358
        %1360 = vdwg.mxu0
        %1361 = vmatpush.msra.mxu0 0.0
        %1362 = vmatpush.msra.mxu0 0.0
        %1363 = vmatpush.msra.mxu0 0.0
        %1364 = vmatpush.msra.mxu0 0.0
        %1365 = vmatpush.msra.mxu0 0.0
        %1366 = vmatpush.msra.mxu0 0.0
        %1367 = vmatpush.msra.mxu0 %v1330
        %1368 = vmatpush.msra.mxu0 %v1329
        %1369 = vmatpush.msra.mxu0 %v1328
        %1370 = vmatpush.msra.mxu0 %v1327
        %1371 = vmatpush.msra.mxu0 %v1326
        %1372 = vmatpush.msra.mxu0 %v1325
        %1373 = vmatpush.msra.mxu0 %v1324
        %1374 = vmatpush.msra.mxu0 %v1323
        %1375 = vmatpush.msra.mxu0 %v1322
        %1376 = vmatpush.msra.mxu0 %v1321
        %1377 = vmatmul.f32.gmra.mxu0 %v1333
        %v1378 = vpop.f32.mrf.mxu0
        %v1379 = vadd.f32 %v1356, %v1378
        %1380 = vmatmul.f32.gmra.mxu0 %v1336
        %v1381 = vpop.f32.mrf.mxu0
        %v1382 = vadd.f32 %v1359, %v1381
        %1383 = vdwg.mxu0
        %s1384 = scalar_lea.vmem %s7, 208
        %v1385 = vld [vmem:[%s1384] sm:$0xff]
        %v1386 = vld [vmem:[%s1384 + $0x8] sm:$0xff]
        %v1387 = vld [vmem:[%s1384 + $0x10] sm:$0xff]
        %v1388 = vld [vmem:[%s1384 + $0x18] sm:$0xff]
        %v1389 = vld [vmem:[%s1384 + $0x20] sm:$0xff]
        %v1390 = vld [vmem:[%s1384 + $0x28] sm:$0xff]
        %v1391 = vld [vmem:[%s1384 + $0x30] sm:$0xff]
        %v1392 = vld [vmem:[%s1384 + $0x38] sm:$0xff]
        %v1393 = vld [vmem:[%s1384 + $0x40] sm:$0xff]
        %v1394 = vld [vmem:[%s1384 + $0x48] sm:$0xff]
        %v1395 = vld [vmem:[%s1384 + $0x50] sm:$0xff]
        %v1396 = vld [vmem:[%s1384 + $0x58] sm:$0xff]
        %v1397 = vld [vmem:[%s1384 + $0x60] sm:$0xff]
        %v1398 = vld [vmem:[%s1384 + $0x68] sm:$0xff]
        %v1399 = vld [vmem:[%s1384 + $0x70] sm:$0xff]
        %v1400 = vld [vmem:[%s1384 + $0x78] sm:$0xff]
        %v1401 = vld [vmem:[%s1384 + $0x80] sm:$0xff]
        %v1402 = vld [vmem:[%s1384 + $0x88] sm:$0xff]
        %v1403 = vld [vmem:[%s1384 + $0x90] sm:$0xff]
        %v1404 = vld [vmem:[%s1384 + $0x98] sm:$0xff]
        %v1405 = vld [vmem:[%s1384 + $0xa0] sm:$0xff]
        %v1406 = vld [vmem:[%s1384 + $0xa8] sm:$0xff]
        %v1407 = vld [vmem:[%s1384 + $0xb0] sm:$0xff]
        %v1408 = vld [vmem:[%s1384 + $0xb8] sm:$0xff]
        %v1409 = vld [vmem:[%s1384 + $0xc0] sm:$0xff]
        %v1410 = vld [vmem:[%s1384 + $0xc8] sm:$0xff]
        %1411 = vmatpush.msra.mxu0 %v1400
        %1412 = vmatpush.msra.mxu0 %v1399
        %1413 = vmatpush.msra.mxu0 %v1398
        %1414 = vmatpush.msra.mxu0 %v1397
        %1415 = vmatpush.msra.mxu0 %v1396
        %1416 = vmatpush.msra.mxu0 %v1395
        %1417 = vmatpush.msra.mxu0 %v1394
        %1418 = vmatpush.msra.mxu0 %v1393
        %1419 = vmatpush.msra.mxu0 %v1392
        %1420 = vmatpush.msra.mxu0 %v1391
        %1421 = vmatpush.msra.mxu0 %v1390
        %1422 = vmatpush.msra.mxu0 %v1389
        %1423 = vmatpush.msra.mxu0 %v1388
        %1424 = vmatpush.msra.mxu0 %v1387
        %1425 = vmatpush.msra.mxu0 %v1386
        %1426 = vmatpush.msra.mxu0 %v1385
        %1427 = vmatmul.f32.gmra.mxu0 %v1301
        %v1428 = vpop.f32.mrf.mxu0
        %v1429 = vadd.f32 0.0, %v1428
        %1430 = vmatmul.f32.gmra.mxu0 %v1303
        %v1431 = vpop.f32.mrf.mxu0
        %v1432 = vadd.f32 0.0, %v1431
        %1433 = vdwg.mxu0
        %1434 = vmatpush.msra.mxu0 0.0
        %1435 = vmatpush.msra.mxu0 0.0
        %1436 = vmatpush.msra.mxu0 0.0
        %1437 = vmatpush.msra.mxu0 0.0
        %1438 = vmatpush.msra.mxu0 0.0
        %1439 = vmatpush.msra.mxu0 0.0
        %1440 = vmatpush.msra.mxu0 %v1410
        %1441 = vmatpush.msra.mxu0 %v1409
        %1442 = vmatpush.msra.mxu0 %v1408
        %1443 = vmatpush.msra.mxu0 %v1407
        %1444 = vmatpush.msra.mxu0 %v1406
        %1445 = vmatpush.msra.mxu0 %v1405
        %1446 = vmatpush.msra.mxu0 %v1404
        %1447 = vmatpush.msra.mxu0 %v1403
        %1448 = vmatpush.msra.mxu0 %v1402
        %1449 = vmatpush.msra.mxu0 %v1401
        %1450 = vmatmul.f32.gmra.mxu0 %v1333
        %v1451 = vpop.f32.mrf.mxu0
        %v1452 = vadd.f32 %v1429, %v1451
        %1453 = vmatmul.f32.gmra.mxu0 %v1336
        %v1454 = vpop.f32.mrf.mxu0
        %v1455 = vadd.f32 %v1432, %v1454
        %1456 = vdwg.mxu0
        %v1457 = vmax.f32 %v1379, %v1452
        %v1458 = vmax.f32 %v1382, %v1455
        %v1459 = vld [vmem:[%s8] sm:$0x3f]
        %vm1460 = vcmask 105472
        %v1462 = vsel %vm1460, %v1459, 0
        %vm1464 = vcmask 1044480
        %v1466 = vsel %vm1464, %v1458, 0
        %1468 = vmatpush.msra.mxu0 0.0
        %1469 = vmatpush.msra.mxu0 0.0
        %1470 = vmatpush.msra.mxu0 0.0
        %1471 = vmatpush.msra.mxu0 0.0
        %1472 = vmatpush.msra.mxu0 0.0
        %1473 = vmatpush.msra.mxu0 0.0
        %1474 = vmatpush.msra.mxu0 0.0
        %1475 = vmatpush.msra.mxu0 0.0
        %1476 = vmatpush.msra.mxu0 0.0
        %1477 = vmatpush.msra.mxu0 0.0
        %1478 = vmatpush.msra.mxu0 0.0
        %1479 = vmatpush.msra.mxu0 0.0
        %1480 = vmatpush.msra.mxu0 0.0
        %1481 = vmatpush.msra.mxu0 0.0
        %1482 = vmatpush.msra.mxu0 %v1466
        %1483 = vmatpush.msra.mxu0 %v1457
        %1484 = vmatmul.f32.gmra.mxu0 %v1462
        %v1485 = vpop.f32.mrf.mxu0
        %v1486 = vadd.f32 0.0, %v1485
        %1487 = vdwg.mxu0
        %s1488 = scalar_lea.vmem %s8, 8
        %v1489 = vld [vmem:[%s1488] sm:$0x3f]
        %v1491 = vsel %vm1460, %v1489, 0
        %1493 = vmatpush.msra.mxu0 0.0
        %1494 = vmatpush.msra.mxu0 0.0
        %1495 = vmatpush.msra.mxu0 0.0
        %1496 = vmatpush.msra.mxu0 0.0
        %1497 = vmatpush.msra.mxu0 0.0
        %1498 = vmatpush.msra.mxu0 0.0
        %1499 = vmatpush.msra.mxu0 0.0
        %1500 = vmatpush.msra.mxu0 0.0
        %1501 = vmatpush.msra.mxu0 0.0
        %1502 = vmatpush.msra.mxu0 0.0
        %1503 = vmatpush.msra.mxu0 0.0
        %1504 = vmatpush.msra.mxu0 0.0
        %1505 = vmatpush.msra.mxu0 0.0
        %1506 = vmatpush.msra.mxu0 0.0
        %1507 = vmatpush.msra.mxu0 %v1466
        %1508 = vmatpush.msra.mxu0 %v1457
        %1509 = vmatmul.f32.gmra.mxu0 %v1491
        %v1510 = vpop.f32.mrf.mxu0
        %v1511 = vadd.f32 0.0, %v1510
        %1512 = vdwg.mxu0
        %v1513 = vmax.f32 %v1486, %v1511
        %vm1514 = vcmask 783360
        %1515 = vst.msk [vmem:[#allocation3] sm:$0x3f] %vm1514, %v1513
        %v1516 = vld [vmem:[#allocation3] sm:$0x1]
        %v1517 = vld [vmem:[%s9] sm:$0xff]
        %v1518 = vld [vmem:[%s9 + $0x8] sm:$0xff]
        %v1519 = vld [vmem:[%s9 + $0x10] sm:$0xff]
        %v1520 = vld [vmem:[%s9 + $0x18] sm:$0xff]
        %v1521 = vld [vmem:[%s9 + $0x20] sm:$0xff]
        %v1522 = vld [vmem:[%s9 + $0x28] sm:$0xff]
        %v1523 = vld [vmem:[%s9 + $0x30] sm:$0xff]
        %v1524 = vld [vmem:[%s9 + $0x38] sm:$0xff]
        %v1525 = vld [vmem:[%s9 + $0x40] sm:$0xff]
        %v1526 = vld [vmem:[%s9 + $0x48] sm:$0xff]
        %v1527 = vld [vmem:[%s9 + $0x50] sm:$0xff]
        %v1528 = vld [vmem:[%s9 + $0x58] sm:$0xff]
        %v1529 = vld [vmem:[#allocation3 + $0x1] sm:$0x1]
        %s1530 = scalar_lea.vmem %s9, 96
        %v1531 = vld [vmem:[%s1530] sm:$0xff]
        %v1532 = vld [vmem:[%s1530 + $0x8] sm:$0xff]
        %v1533 = vld [vmem:[%s1530 + $0x10] sm:$0xff]
        %v1534 = vld [vmem:[%s1530 + $0x18] sm:$0xff]
        %v1535 = vld [vmem:[%s1530 + $0x20] sm:$0xff]
        %v1536 = vld [vmem:[%s1530 + $0x28] sm:$0xff]
        %v1537 = vld [vmem:[%s1530 + $0x30] sm:$0xff]
        %v1538 = vld [vmem:[%s1530 + $0x38] sm:$0xff]
        %v1539 = vld [vmem:[%s1530 + $0x40] sm:$0xff]
        %v1540 = vld [vmem:[%s1530 + $0x48] sm:$0xff]
        %v1541 = vld [vmem:[%s1530 + $0x50] sm:$0xff]
        %v1542 = vld [vmem:[%s1530 + $0x58] sm:$0xff]
        %vm1543 = vcmask 785408
        %v1545 = vsel %vm1543, %v1529, 0
        %1547 = vmatpush.msra.mxu0 0.0
        %1548 = vmatpush.msra.mxu0 0.0
        %1549 = vmatpush.msra.mxu0 0.0
        %1550 = vmatpush.msra.mxu0 0.0
        %1551 = vmatpush.msra.mxu0 %v1542
        %1552 = vmatpush.msra.mxu0 %v1541
        %1553 = vmatpush.msra.mxu0 %v1540
        %1554 = vmatpush.msra.mxu0 %v1539
        %1555 = vmatpush.msra.mxu0 %v1538
        %1556 = vmatpush.msra.mxu0 %v1537
        %1557 = vmatpush.msra.mxu0 %v1536
        %1558 = vmatpush.msra.mxu0 %v1535
        %1559 = vmatpush.msra.mxu0 %v1534
        %1560 = vmatpush.msra.mxu0 %v1533
        %1561 = vmatpush.msra.mxu0 %v1532
        %1562 = vmatpush.msra.mxu0 %v1531
        %1563 = vmatmul.f32.gmra.mxu0 %v1545
        %v1564 = vpop.f32.mrf.mxu0
        %v1565 = vadd.f32 0.0, %v1564
        %1566 = vdwg.mxu0
        %v1568 = vsel %vm1543, %v1516, 0
        %1570 = vmatpush.msra.mxu0 0.0
        %1571 = vmatpush.msra.mxu0 0.0
        %1572 = vmatpush.msra.mxu0 0.0
        %1573 = vmatpush.msra.mxu0 0.0
        %1574 = vmatpush.msra.mxu0 %v1528
        %1575 = vmatpush.msra.mxu0 %v1527
        %1576 = vmatpush.msra.mxu0 %v1526
        %1577 = vmatpush.msra.mxu0 %v1525
        %1578 = vmatpush.msra.mxu0 %v1524
        %1579 = vmatpush.msra.mxu0 %v1523
        %1580 = vmatpush.msra.mxu0 %v1522
        %1581 = vmatpush.msra.mxu0 %v1521
        %1582 = vmatpush.msra.mxu0 %v1520
        %1583 = vmatpush.msra.mxu0 %v1519
        %1584 = vmatpush.msra.mxu0 %v1518
        %1585 = vmatpush.msra.mxu0 %v1517
        %1586 = vmatmul.f32.gmra.mxu0 %v1568
        %v1587 = vpop.f32.mrf.mxu0
        %v1588 = vadd.f32 %v1565, %v1587
        %1589 = vdwg.mxu0
        %v1590 = vld [vmem:[#allocation3 + $0x2] sm:$0x1]
        %s1591 = scalar_lea.vmem %s9, 192
        %v1592 = vld [vmem:[%s1591] sm:$0xff]
        %v1593 = vld [vmem:[%s1591 + $0x8] sm:$0xff]
        %v1594 = vld [vmem:[%s1591 + $0x10] sm:$0xff]
        %v1595 = vld [vmem:[%s1591 + $0x18] sm:$0xff]
        %v1596 = vld [vmem:[%s1591 + $0x20] sm:$0xff]
        %v1597 = vld [vmem:[%s1591 + $0x28] sm:$0xff]
        %v1598 = vld [vmem:[%s1591 + $0x30] sm:$0xff]
        %v1599 = vld [vmem:[%s1591 + $0x38] sm:$0xff]
        %v1600 = vld [vmem:[%s1591 + $0x40] sm:$0xff]
        %v1601 = vld [vmem:[%s1591 + $0x48] sm:$0xff]
        %v1602 = vld [vmem:[%s1591 + $0x50] sm:$0xff]
        %v1603 = vld [vmem:[%s1591 + $0x58] sm:$0xff]
        %v1605 = vsel %vm1543, %v1590, 0
        %1607 = vmatpush.msra.mxu0 0.0
        %1608 = vmatpush.msra.mxu0 0.0
        %1609 = vmatpush.msra.mxu0 0.0
        %1610 = vmatpush.msra.mxu0 0.0
        %1611 = vmatpush.msra.mxu0 %v1603
        %1612 = vmatpush.msra.mxu0 %v1602
        %1613 = vmatpush.msra.mxu0 %v1601
        %1614 = vmatpush.msra.mxu0 %v1600
        %1615 = vmatpush.msra.mxu0 %v1599
        %1616 = vmatpush.msra.mxu0 %v1598
        %1617 = vmatpush.msra.mxu0 %v1597
        %1618 = vmatpush.msra.mxu0 %v1596
        %1619 = vmatpush.msra.mxu0 %v1595
        %1620 = vmatpush.msra.mxu0 %v1594
        %1621 = vmatpush.msra.mxu0 %v1593
        %1622 = vmatpush.msra.mxu0 %v1592
        %1623 = vmatmul.f32.gmra.mxu0 %v1605
        %v1624 = vpop.f32.mrf.mxu0
        %v1625 = vadd.f32 0.0, %v1624
        %1626 = vdwg.mxu0
        %v1627 = vadd.f32 %v1588, %v1625
        %v1628 = vld [vmem:[#allocation3 + $0x3] sm:$0x1]
        %s1629 = scalar_lea.vmem %s9, 288
        %v1630 = vld [vmem:[%s1629] sm:$0xff]
        %v1631 = vld [vmem:[%s1629 + $0x8] sm:$0xff]
        %v1632 = vld [vmem:[%s1629 + $0x10] sm:$0xff]
        %v1633 = vld [vmem:[%s1629 + $0x18] sm:$0xff]
        %v1634 = vld [vmem:[%s1629 + $0x20] sm:$0xff]
        %v1635 = vld [vmem:[%s1629 + $0x28] sm:$0xff]
        %v1636 = vld [vmem:[%s1629 + $0x30] sm:$0xff]
        %v1637 = vld [vmem:[%s1629 + $0x38] sm:$0xff]
        %v1638 = vld [vmem:[%s1629 + $0x40] sm:$0xff]
        %v1639 = vld [vmem:[%s1629 + $0x48] sm:$0xff]
        %v1640 = vld [vmem:[%s1629 + $0x50] sm:$0xff]
        %v1641 = vld [vmem:[%s1629 + $0x58] sm:$0xff]
        %v1643 = vsel %vm1543, %v1628, 0
        %1645 = vmatpush.msra.mxu0 0.0
        %1646 = vmatpush.msra.mxu0 0.0
        %1647 = vmatpush.msra.mxu0 0.0
        %1648 = vmatpush.msra.mxu0 0.0
        %1649 = vmatpush.msra.mxu0 %v1641
        %1650 = vmatpush.msra.mxu0 %v1640
        %1651 = vmatpush.msra.mxu0 %v1639
        %1652 = vmatpush.msra.mxu0 %v1638
        %1653 = vmatpush.msra.mxu0 %v1637
        %1654 = vmatpush.msra.mxu0 %v1636
        %1655 = vmatpush.msra.mxu0 %v1635
        %1656 = vmatpush.msra.mxu0 %v1634
        %1657 = vmatpush.msra.mxu0 %v1633
        %1658 = vmatpush.msra.mxu0 %v1632
        %1659 = vmatpush.msra.mxu0 %v1631
        %1660 = vmatpush.msra.mxu0 %v1630
        %1661 = vmatmul.f32.gmra.mxu0 %v1643
        %v1662 = vpop.f32.mrf.mxu0
        %v1663 = vadd.f32 0.0, %v1662
        %1664 = vdwg.mxu0
        %v1665 = vadd.f32 %v1627, %v1663
        %v1666 = vld [vmem:[#allocation3 + $0x4] sm:$0x1]
        %s1667 = scalar_lea.vmem %s9, 384
        %v1668 = vld [vmem:[%s1667] sm:$0xff]
        %v1669 = vld [vmem:[%s1667 + $0x8] sm:$0xff]
        %v1670 = vld [vmem:[%s1667 + $0x10] sm:$0xff]
        %v1671 = vld [vmem:[%s1667 + $0x18] sm:$0xff]
        %v1672 = vld [vmem:[%s1667 + $0x20] sm:$0xff]
        %v1673 = vld [vmem:[%s1667 + $0x28] sm:$0xff]
        %v1674 = vld [vmem:[%s1667 + $0x30] sm:$0xff]
        %v1675 = vld [vmem:[%s1667 + $0x38] sm:$0xff]
        %v1676 = vld [vmem:[%s1667 + $0x40] sm:$0xff]
        %v1677 = vld [vmem:[%s1667 + $0x48] sm:$0xff]
        %v1678 = vld [vmem:[%s1667 + $0x50] sm:$0xff]
        %v1679 = vld [vmem:[%s1667 + $0x58] sm:$0xff]
        %v1681 = vsel %vm1543, %v1666, 0
        %1683 = vmatpush.msra.mxu0 0.0
        %1684 = vmatpush.msra.mxu0 0.0
        %1685 = vmatpush.msra.mxu0 0.0
        %1686 = vmatpush.msra.mxu0 0.0
        %1687 = vmatpush.msra.mxu0 %v1679
        %1688 = vmatpush.msra.mxu0 %v1678
        %1689 = vmatpush.msra.mxu0 %v1677
        %1690 = vmatpush.msra.mxu0 %v1676
        %1691 = vmatpush.msra.mxu0 %v1675
        %1692 = vmatpush.msra.mxu0 %v1674
        %1693 = vmatpush.msra.mxu0 %v1673
        %1694 = vmatpush.msra.mxu0 %v1672
        %1695 = vmatpush.msra.mxu0 %v1671
        %1696 = vmatpush.msra.mxu0 %v1670
        %1697 = vmatpush.msra.mxu0 %v1669
        %1698 = vmatpush.msra.mxu0 %v1668
        %1699 = vmatmul.f32.gmra.mxu0 %v1681
        %v1700 = vpop.f32.mrf.mxu0
        %v1701 = vadd.f32 0.0, %v1700
        %1702 = vdwg.mxu0
        %v1703 = vadd.f32 %v1665, %v1701
        %v1704 = vld [vmem:[#allocation3 + $0x5] sm:$0x1]
        %s1705 = scalar_lea.vmem %s9, 480
        %v1706 = vld [vmem:[%s1705] sm:$0xff]
        %v1707 = vld [vmem:[%s1705 + $0x8] sm:$0xff]
        %v1708 = vld [vmem:[%s1705 + $0x10] sm:$0xff]
        %v1709 = vld [vmem:[%s1705 + $0x18] sm:$0xff]
        %v1710 = vld [vmem:[%s1705 + $0x20] sm:$0xff]
        %v1711 = vld [vmem:[%s1705 + $0x28] sm:$0xff]
        %v1712 = vld [vmem:[%s1705 + $0x30] sm:$0xff]
        %v1713 = vld [vmem:[%s1705 + $0x38] sm:$0xff]
        %v1714 = vld [vmem:[%s1705 + $0x40] sm:$0xff]
        %v1715 = vld [vmem:[%s1705 + $0x48] sm:$0xff]
        %v1716 = vld [vmem:[%s1705 + $0x50] sm:$0xff]
        %v1717 = vld [vmem:[%s1705 + $0x58] sm:$0xff]
        %v1719 = vsel %vm1543, %v1704, 0
        %1721 = vmatpush.msra.mxu0 0.0
        %1722 = vmatpush.msra.mxu0 0.0
        %1723 = vmatpush.msra.mxu0 0.0
        %1724 = vmatpush.msra.mxu0 0.0
        %1725 = vmatpush.msra.mxu0 %v1717
        %1726 = vmatpush.msra.mxu0 %v1716
        %1727 = vmatpush.msra.mxu0 %v1715
        %1728 = vmatpush.msra.mxu0 %v1714
        %1729 = vmatpush.msra.mxu0 %v1713
        %1730 = vmatpush.msra.mxu0 %v1712
        %1731 = vmatpush.msra.mxu0 %v1711
        %1732 = vmatpush.msra.mxu0 %v1710
        %1733 = vmatpush.msra.mxu0 %v1709
        %1734 = vmatpush.msra.mxu0 %v1708
        %1735 = vmatpush.msra.mxu0 %v1707
        %1736 = vmatpush.msra.mxu0 %v1706
        %1737 = vmatmul.f32.gmra.mxu0 %v1719
        %v1738 = vpop.f32.mrf.mxu0
        %v1739 = vadd.f32 0.0, %v1738
        %1740 = vdwg.mxu0
        %v1741 = vadd.f32 %v1703, %v1739
        %v1742 = vld [vmem:[%s10] sm:$0x1]
        %v1743 = vadd.f32 %v1741, %v1742
        %v1744 = vmax.f32 %v1743, 0.0
        %v1745 = vld [vmem:[%s11] sm:$0xff]
        %v1746 = vld [vmem:[%s11 + $0x8] sm:$0xff]
        %v1747 = vld [vmem:[%s11 + $0x10] sm:$0xff]
        %v1748 = vld [vmem:[%s11 + $0x18] sm:$0xff]
        %v1749 = vld [vmem:[%s11 + $0x20] sm:$0xff]
        %v1750 = vld [vmem:[%s11 + $0x28] sm:$0xff]
        %v1751 = vld [vmem:[%s11 + $0x30] sm:$0xff]
        %v1752 = vld [vmem:[%s11 + $0x38] sm:$0xff]
        %v1753 = vld [vmem:[%s11 + $0x40] sm:$0xff]
        %v1754 = vld [vmem:[%s11 + $0x48] sm:$0xff]
        %v1755 = vld [vmem:[%s11 + $0x50] sm:$0xff]
        %v1756 = vld [vmem:[%s11 + $0x58] sm:$0xff]
        %v1757 = vld [vmem:[%s11 + $0x60] sm:$0xff]
        %v1758 = vld [vmem:[%s11 + $0x68] sm:$0xff]
        %v1759 = vld [vmem:[%s11 + $0x70] sm:$0xff]
        %v1760 = vld [vmem:[%s12] sm:$0x1]
        %vm1761 = vcmask 982016
        %v1763 = vsel %vm1761, %v1744, 0
        %1765 = vmatpush.msra.mxu0 0.0
        %1766 = vmatpush.msra.mxu0 %v1759
        %1767 = vmatpush.msra.mxu0 %v1758
        %1768 = vmatpush.msra.mxu0 %v1757
        %1769 = vmatpush.msra.mxu0 %v1756
        %1770 = vmatpush.msra.mxu0 %v1755
        %1771 = vmatpush.msra.mxu0 %v1754
        %1772 = vmatpush.msra.mxu0 %v1753
        %1773 = vmatpush.msra.mxu0 %v1752
        %1774 = vmatpush.msra.mxu0 %v1751
        %1775 = vmatpush.msra.mxu0 %v1750
        %1776 = vmatpush.msra.mxu0 %v1749
        %1777 = vmatpush.msra.mxu0 %v1748
        %1778 = vmatpush.msra.mxu0 %v1747
        %1779 = vmatpush.msra.mxu0 %v1746
        %1780 = vmatpush.msra.mxu0 %v1745
        %1781 = vmatmul.f32.gmra.mxu0 %v1763
        %v1782 = vpop.f32.mrf.mxu0
        %v1783 = vadd.f32 %v1760, %v1782
        %1784 = vdwg.mxu0
        %v1785 = vmax.f32 %v1783, 0.0
        %v1786 = vld [vmem:[%s13] sm:$0xff]
        %v1787 = vld [vmem:[%s13 + $0x8] sm:$0xff]
        %v1788 = vld [vmem:[%s13 + $0x10] sm:$0xff]
        %v1789 = vld [vmem:[%s13 + $0x18] sm:$0xff]
        %v1790 = vld [vmem:[%s13 + $0x20] sm:$0xff]
        %v1791 = vld [vmem:[%s13 + $0x28] sm:$0xff]
        %v1792 = vld [vmem:[%s13 + $0x30] sm:$0xff]
        %v1793 = vld [vmem:[%s13 + $0x38] sm:$0xff]
        %v1794 = vld [vmem:[%s13 + $0x40] sm:$0xff]
        %v1795 = vld [vmem:[%s13 + $0x48] sm:$0xff]
        %v1796 = vld [vmem:[%s13 + $0x50] sm:$0xf]
        %v1797 = vld [vmem:[%s14] sm:$0x1]
        %vm1798 = vcmask 687104
        %v1800 = vsel %vm1798, %v1785, 0
        %v1803 = vsel %vm807, %v1796, 0
        %1805 = vmatpush.msra.mxu0 0.0
        %1806 = vmatpush.msra.mxu0 0.0
        %1807 = vmatpush.msra.mxu0 0.0
        %1808 = vmatpush.msra.mxu0 0.0
        %1809 = vmatpush.msra.mxu0 0.0
        %1810 = vmatpush.msra.mxu0 %v1803
        %1811 = vmatpush.msra.mxu0 %v1795
        %1812 = vmatpush.msra.mxu0 %v1794
        %1813 = vmatpush.msra.mxu0 %v1793
        %1814 = vmatpush.msra.mxu0 %v1792
        %1815 = vmatpush.msra.mxu0 %v1791
        %1816 = vmatpush.msra.mxu0 %v1790
        %1817 = vmatpush.msra.mxu0 %v1789
        %1818 = vmatpush.msra.mxu0 %v1788
        %1819 = vmatpush.msra.mxu0 %v1787
        %1820 = vmatpush.msra.mxu0 %v1786
        %1821 = vmatmul.f32.gmra.mxu0 %v1800
        %v1822 = vpop.f32.mrf.mxu0
        %v1823 = vadd.f32 %v1797, %v1822
        %1824 = vdwg.mxu0
        %vm1825 = vcmask 73728
        %1826 = vst.msk [vmem:[%s486] sm:$0x1] %vm1825, %v1823
        %s1827 = sand.u32 %s357, 1
        %s1828 = scalar_lea.sflag [#allocation5], %s1827
        %s1829 = sand.u32 %s357, 1
        %s1830 = scalar_lea.vmem [#allocation4], %s1829
        // Predicated region
        $region81: #{net_forward.1} parent=79 // pred_check
          %p1831 = pneg %p367
        $region82: #{net_forward.1} parent=79 // pred_check_branch
          %1833 = sbr.rel (%p1831) target = $region84
        $region83: #{net_forward.1} parent=79 // pred_region
          %1835 = vsyncadd %s1828, 0
          %s1836 = scalar_lea.hbm %s15, %s29
          %s1838 = sshll.u32 %s1830, 4
          %s1839 = int_to_ptr.vmem [resolvable:$true] %s1838
          %s1840 = sshll.u32 %s1836, 4
          %s1841 = int_to_ptr.hbm [resolvable:$true] %s1840
          %1843 = dma.vmem_to_hbm [thread:$0]  %s1839, 16, %s1841, %s1828
        $region84: #{net_forward.1} parent=79 // pred_fallthru
          _
      $region80: #{net_forward.1} parent=5 // pred_fallthru
        _
      %p1844 = scmp.le.s32.totalorder 2, %s24
      // Predicated region
      $region85: #{net_forward.1} parent=5 // pred_check
        %p1845 = pneg %p1844
      $region86: #{net_forward.1} parent=5 // pred_check_branch
        %1847 = sbr.rel (%p1845) target = $region88
      $region87: #{net_forward.1} parent=5 // pred_region
        %s1848 = ssub.s32 %s24, 2
        // Predicated region
        $region89: #{net_forward.1} parent=87 // pred_check
          %p1849 = pneg %p373
        $region90: #{net_forward.1} parent=87 // pred_check_branch
          %1851 = sbr.rel (%p1849) target = $region92
        $region91: #{net_forward.1} parent=87 // pred_region
          %s1852 = sand.u32 %s358, 1
          %s1853 = scalar_lea.sflag [#allocation5], %s1852
          %s1854 = sand.u32 %s358, 1
          %s1855 = scalar_lea.vmem [#allocation4], %s1854
          %1857 = dma.done %s1853, 16
        $region92: #{net_forward.1} parent=87 // pred_fallthru
          _
      $region88: #{net_forward.1} parent=5 // pred_fallthru
        _
    $region6: #{net_forward.1} parent=1 // loop_footer
      %s28 = sadd.s32 1, %s24
    $region7: #{net_forward.1} parent=1 // loop_footer_branch
      %23 = sbr.rel target = $region3
    $region8: #{net_forward.1} parent=1 // loop_exit
      _
    %1858 = vsyncpa [#allocation5], 1
    %s1859 = scalar_lea.sflag [#allocation5], 1
    %1860 = vsyncpa %s1859, 1

</llo_original>
